<compile_context>
chip_gen: v7x
topology: tpu7x:2x2x1
jax: 0.10.0
libtpu: 0.0.40
codegen_flags: <defaults>
</compile_context>

<pallas_src>
import functools

import jax
import jax.numpy as jnp
from jax.experimental import pallas as pl
from jax.experimental.pallas import tpu as pltpu


def _camera_memory_loss_kernel(gamma, cam_gamma, m, cam_m,
                               id_w_over_b, cam_w_over_b, dist_w_over_b,
                               q, nq,
                               feat_ref, nt_feat_ref, mem_ref, lab_ref,
                               loss_ref):
    # --- normalize in f32 (VPU/EUP work stays f32; v5e-safe) ----------------
    f = feat_ref[...].astype(jnp.float32)
    nf = nt_feat_ref[...].astype(jnp.float32)
    f = f * jax.lax.rsqrt(jnp.sum(f * f, axis=-1, keepdims=True) + 1e-12)
    nf = nf * jax.lax.rsqrt(jnp.sum(nf * nf, axis=-1, keepdims=True) + 1e-12)

    # --- two lean MXU passes: (B, D) x (D, Q) and (B, D) x (D, NQ) ----------
    # bf16 operands, f32 accumulation; static lane-aligned slices of the slab.
    # (Splitting the dots avoids the f32 concat + bf16 repack temp and the two
    # unused quadrants of a fused (2B, Q+NQ) result.)
    dims = (((1,), (0,)), ((), ()))
    id_sim = jax.lax.dot_general(
        f.astype(jnp.bfloat16), mem_ref[:, :q], dims,
        preferred_element_type=jnp.float32)                           # (B, Q)
    cam_sim = jax.lax.dot_general(
        nf.astype(jnp.bfloat16), mem_ref[:, q:], dims,
        preferred_element_type=jnp.float32)                           # (B, NQ)

    id_lab = lab_ref[:, 0:1]        # (B, 1) int32
    nt_lab = lab_ref[:, 1:2]        # (B, 1) int32

    def margin_ce(s, labels, margin, inv_temp):
        col = jax.lax.broadcasted_iota(jnp.int32, s.shape, 1)
        onehot = (col == labels)
        # additive margin on the cosine similarity, then temperature scaling
        logits = jnp.where(onehot, s - margin, s) * inv_temp
        mx = jnp.max(logits, axis=-1, keepdims=True)
        lse = mx + jnp.log(jnp.sum(jnp.exp(logits - mx), axis=-1, keepdims=True))
        tgt = jnp.sum(jnp.where(onehot, logits, 0.0), axis=-1, keepdims=True)
        return lse - tgt                                              # (B, 1)

    id_loss = margin_ce(id_sim, id_lab, m, 1.0 / gamma)
    cam_loss = margin_ce(cam_sim, nt_lab, cam_m, 1.0 / cam_gamma)
    dist_loss = 1.0 - jnp.sum(f * nf, axis=-1, keepdims=True)         # (B, 1)

    total = (id_w_over_b * jnp.sum(id_loss)
             + cam_w_over_b * jnp.sum(cam_loss)
             + dist_w_over_b * jnp.sum(dist_loss))
    loss_ref[0, 0] = total


class CameraLossPallas:
    """Forward-only Pallas implementation of CameraLoss.memory_forward."""

    def __init__(self, dim=768, queue_size=256, nt_queue_size=256,
                 cam_m=0.3, cam_gamma=0.1, m=0.25, gamma=0.05,
                 cam_weight=1.0, id_weight=1.0, dist_weight=0.5,
                 detach_aug=True):
        self.dim = dim
        self.queue_size = queue_size
        self.nt_queue_size = nt_queue_size
        self.cam_m = float(cam_m)
        self.cam_gamma = float(cam_gamma)
        self.m = float(m)
        self.gamma = float(gamma)
        self.cam_weight = float(cam_weight)
        self.id_weight = float(id_weight)
        self.dist_weight = float(dist_weight)
        self.detach_aug = detach_aug

        # Deterministic memory-bank initialization (L2-normalized rows),
        # stored pre-transposed [D, Q] / [D, NQ], concatenated along N, bf16.
        # One HBM->VMEM DMA for both banks, no in-kernel transpose.
        # TODO(synk): a trained/stateful PyTorch bank would be loaded here.
        kq, knt = jax.random.split(jax.random.PRNGKey(42))
        id_mem = jax.random.normal(kq, (queue_size, dim), jnp.float32)
        nt_mem = jax.random.normal(knt, (nt_queue_size, dim), jnp.float32)
        id_mem = id_mem / jnp.linalg.norm(id_mem, axis=-1, keepdims=True)
        nt_mem = nt_mem / jnp.linalg.norm(nt_mem, axis=-1, keepdims=True)
        self.mem_t = jnp.concatenate([id_mem.T, nt_mem.T],
                                     axis=1).astype(jnp.bfloat16)     # (D, Q+NQ)

    def __call__(self, target_feat, id_labels, cam_labels,
                 nt_feat=None, nt_cam_labels=None):
        # cam_labels (camera ids of the target batch) are carried for signature
        # parity; the simplified Memory forward indexes the non-target bank
        # directly with nt_cam_labels.
        del cam_labels
        if self.detach_aug:
            nt_feat = jax.lax.stop_gradient(nt_feat)

        b = target_feat.shape[0]
        d = self.dim
        q, nq = self.queue_size, self.nt_queue_size
        labels = jnp.concatenate(
            [id_labels.astype(jnp.int32).reshape(b, 1),
             nt_cam_labels.astype(jnp.int32).reshape(b, 1)], axis=1)  # (B, 2)

        kernel = functools.partial(
            _camera_memory_loss_kernel,
            self.gamma, self.cam_gamma, self.m, self.cam_m,
            self.id_weight / b, self.cam_weight / b, self.dist_weight / b,
            q, nq)

        vmem = pl.BlockSpec(memory_space=pltpu.MemorySpace.VMEM)
        smem = pl.BlockSpec(memory_space=pltpu.MemorySpace.SMEM)

        # Accurate cost hint so XLA schedules/overlaps the surrounding HLOs
        # around this sub-microsecond custom call (the weight-slab DMA is the
        # dominant cost; give XLA the real byte count).
        feat_bytes = target_feat.dtype.itemsize
        cost = pl.CostEstimate(
            flops=2 * b * d * (q + nq) + 8 * b * d,
            transcendentals=2 * b * (q + nq) + 2 * b,
            bytes_accessed=(2 * b * d * feat_bytes          # two feature blocks
                            + d * (q + nq) * 2              # bf16 weight slab
                            + b * 2 * 4 + 4))               # labels + scalar out

        # TODO(synk): if several micro-batches / camera groups run per step,
        # stack them into one call (raises MXU M-utilization, amortizes launch
        # overhead) and/or prefetch self.mem_t via a cross-call DMA future.
        loss = pl.pallas_call(
            kernel,
            out_shape=jax.ShapeDtypeStruct((1, 1), jnp.float32),
            in_specs=[vmem, vmem, vmem, vmem],
            out_specs=smem,
            cost_estimate=cost,
        )(target_feat, nt_feat, self.mem_t, labels)

        return loss[0, 0]


if __name__ == "__main__":
    B, D = 8, 768
    Q, NQ = 256, 256

    key = jax.random.PRNGKey(0)
    k1, k2, k3, k4, k5 = jax.random.split(key, 5)
    target_feat = jax.random.normal(k1, (B, D), jnp.float32)
    nt_feat = jax.random.normal(k2, (B, D), jnp.float32)
    id_labels = jax.random.randint(k3, (B,), 0, Q, jnp.int32)
    cam_labels = jax.random.randint(k4, (B,), 0, 8, jnp.int32)
    nt_cam_labels = jax.random.randint(k5, (B,), 0, NQ, jnp.int32)

    loss_mod = CameraLossPallas(dim=D, queue_size=Q, nt_queue_size=NQ)
    loss = loss_mod(target_feat, id_labels, cam_labels, nt_feat, nt_cam_labels)
    loss = jax.block_until_ready(loss)
    assert jnp.isfinite(loss)
    print("KERNEL_OK")
</pallas_src>

<mosaic_0001>
module attributes {stable_mosaic.version = 11 : i64} {
  func.func @_camera_memory_loss_kernel(%arg0: memref<8x768xf32, #tpu.memory_space<vmem>>, %arg1: memref<8x768xf32, #tpu.memory_space<vmem>>, %arg2: memref<768x512xbf16, #tpu.memory_space<vmem>>, %arg3: memref<8x2xi32, #tpu.memory_space<vmem>>, %arg4: memref<1x1xf32, #tpu.memory_space<smem>>) attributes {dimension_semantics = [], scalar_prefetch = 0 : i64, scratch_operands = 0 : i64, tpu.core_type = #tpu.core_type<tc>} {
    %c0 = arith.constant 0 : index
    %c0_0 = arith.constant 0 : index
    %0 = vector.load %arg0[%c0, %c0_0] : memref<8x768xf32, #tpu.memory_space<vmem>>, vector<8x768xf32>
    %c0_1 = arith.constant 0 : index
    %c0_2 = arith.constant 0 : index
    %1 = vector.load %arg1[%c0_1, %c0_2] : memref<8x768xf32, #tpu.memory_space<vmem>>, vector<8x768xf32>
    %2 = arith.mulf %0, %0 : vector<8x768xf32>
    %cst = arith.constant dense<0.000000e+00> : vector<8xf32>
    %3 = vector.multi_reduction <add>, %2, %cst [1] : vector<8x768xf32> to vector<8xf32>
    %4 = vector.shape_cast %3 : vector<8xf32> to vector<8x1xf32>
    %cst_3 = arith.constant 9.99999996E-13 : f32
    %5 = vector.broadcast %cst_3 : f32 to vector<8x1xf32>
    %6 = arith.addf %4, %5 : vector<8x1xf32>
    %7 = math.rsqrt %6 : vector<8x1xf32>
    %8 = vector.broadcast %7 : vector<8x1xf32> to vector<8x768xf32>
    %9 = arith.mulf %0, %8 : vector<8x768xf32>
    %10 = arith.mulf %1, %1 : vector<8x768xf32>
    %cst_4 = arith.constant dense<0.000000e+00> : vector<8xf32>
    %11 = vector.multi_reduction <add>, %10, %cst_4 [1] : vector<8x768xf32> to vector<8xf32>
    %12 = vector.shape_cast %11 : vector<8xf32> to vector<8x1xf32>
    %cst_5 = arith.constant 9.99999996E-13 : f32
    %13 = vector.broadcast %cst_5 : f32 to vector<8x1xf32>
    %14 = arith.addf %12, %13 : vector<8x1xf32>
    %15 = math.rsqrt %14 : vector<8x1xf32>
    %16 = vector.broadcast %15 : vector<8x1xf32> to vector<8x768xf32>
    %17 = arith.mulf %1, %16 : vector<8x768xf32>
    %18 = arith.truncf %9 : vector<8x768xf32> to vector<8x768xbf16>
    %c0_6 = arith.constant 0 : index
    %c0_7 = arith.constant 0 : index
    %19 = vector.load %arg2[%c0_6, %c0_7] : memref<768x512xbf16, #tpu.memory_space<vmem>>, vector<768x256xbf16>
    %cst_8 = arith.constant dense<0.000000e+00> : vector<8x256xf32>
    %20 = tpu.matmul %18, %19, %cst_8 {dimension_numbers = #tpu.dot_dimension_numbers<[1], [0], [0], [1], [0, 0, 1, 1], [], []>} : vector<8x768xbf16>, vector<768x256xbf16>, vector<8x256xf32> -> vector<8x256xf32>
    %21 = arith.truncf %17 : vector<8x768xf32> to vector<8x768xbf16>
    %c0_9 = arith.constant 0 : index
    %c256 = arith.constant 256 : index
    %22 = vector.load %arg2[%c0_9, %c256] : memref<768x512xbf16, #tpu.memory_space<vmem>>, vector<768x256xbf16>
    %cst_10 = arith.constant dense<0.000000e+00> : vector<8x256xf32>
    %23 = tpu.matmul %21, %22, %cst_10 {dimension_numbers = #tpu.dot_dimension_numbers<[1], [0], [0], [1], [0, 0, 1, 1], [], []>} : vector<8x768xbf16>, vector<768x256xbf16>, vector<8x256xf32> -> vector<8x256xf32>
    %c0_11 = arith.constant 0 : index
    %c0_12 = arith.constant 0 : index
    %24 = vector.load %arg3[%c0_11, %c0_12] : memref<8x2xi32, #tpu.memory_space<vmem>>, vector<8x1xi32>
    %c0_13 = arith.constant 0 : index
    %c1 = arith.constant 1 : index
    %25 = vector.load %arg3[%c0_13, %c1] : memref<8x2xi32, #tpu.memory_space<vmem>>, vector<8x1xi32>
    %26 = tpu.iota {dimensions = array<i32: 1>} : vector<8x256xi32>
    %27 = vector.broadcast %24 : vector<8x1xi32> to vector<8x256xi32>
    %28 = arith.cmpi eq, %26, %27 : vector<8x256xi32>
    %cst_14 = arith.constant 2.500000e-01 : f32
    %29 = vector.broadcast %cst_14 : f32 to vector<8x256xf32>
    %30 = arith.subf %20, %29 : vector<8x256xf32>
    %31 = arith.select %28, %30, %20 : vector<8x256xi1>, vector<8x256xf32>
    %cst_15 = arith.constant 2.000000e+01 : f32
    %32 = vector.broadcast %cst_15 : f32 to vector<8x256xf32>
    %33 = arith.mulf %31, %32 : vector<8x256xf32>
    %cst_16 = arith.constant dense<0xFF800000> : vector<8xf32>
    %34 = vector.multi_reduction <maximumf>, %33, %cst_16 [1] : vector<8x256xf32> to vector<8xf32>
    %35 = vector.shape_cast %34 : vector<8xf32> to vector<8x1xf32>
    %36 = vector.broadcast %35 : vector<8x1xf32> to vector<8x256xf32>
    %37 = arith.subf %33, %36 : vector<8x256xf32>
    %38 = math.exp %37 : vector<8x256xf32>
    %cst_17 = arith.constant dense<0.000000e+00> : vector<8xf32>
    %39 = vector.multi_reduction <add>, %38, %cst_17 [1] : vector<8x256xf32> to vector<8xf32>
    %40 = vector.shape_cast %39 : vector<8xf32> to vector<8x1xf32>
    %41 = math.log %40 : vector<8x1xf32>
    %42 = arith.addf %35, %41 : vector<8x1xf32>
    %cst_18 = arith.constant 0.000000e+00 : f32
    %43 = vector.broadcast %cst_18 : f32 to vector<8x256xf32>
    %44 = arith.select %28, %33, %43 : vector<8x256xi1>, vector<8x256xf32>
    %cst_19 = arith.constant dense<0.000000e+00> : vector<8xf32>
    %45 = vector.multi_reduction <add>, %44, %cst_19 [1] : vector<8x256xf32> to vector<8xf32>
    %46 = vector.shape_cast %45 : vector<8xf32> to vector<8x1xf32>
    %47 = arith.subf %42, %46 : vector<8x1xf32>
    %48 = tpu.iota {dimensions = array<i32: 1>} : vector<8x256xi32>
    %49 = vector.broadcast %25 : vector<8x1xi32> to vector<8x256xi32>
    %50 = arith.cmpi eq, %48, %49 : vector<8x256xi32>
    %cst_20 = arith.constant 3.000000e-01 : f32
    %51 = vector.broadcast %cst_20 : f32 to vector<8x256xf32>
    %52 = arith.subf %23, %51 : vector<8x256xf32>
    %53 = arith.select %50, %52, %23 : vector<8x256xi1>, vector<8x256xf32>
    %cst_21 = arith.constant 1.000000e+01 : f32
    %54 = vector.broadcast %cst_21 : f32 to vector<8x256xf32>
    %55 = arith.mulf %53, %54 : vector<8x256xf32>
    %cst_22 = arith.constant dense<0xFF800000> : vector<8xf32>
    %56 = vector.multi_reduction <maximumf>, %55, %cst_22 [1] : vector<8x256xf32> to vector<8xf32>
    %57 = vector.shape_cast %56 : vector<8xf32> to vector<8x1xf32>
    %58 = vector.broadcast %57 : vector<8x1xf32> to vector<8x256xf32>
    %59 = arith.subf %55, %58 : vector<8x256xf32>
    %60 = math.exp %59 : vector<8x256xf32>
    %cst_23 = arith.constant dense<0.000000e+00> : vector<8xf32>
    %61 = vector.multi_reduction <add>, %60, %cst_23 [1] : vector<8x256xf32> to vector<8xf32>
    %62 = vector.shape_cast %61 : vector<8xf32> to vector<8x1xf32>
    %63 = math.log %62 : vector<8x1xf32>
    %64 = arith.addf %57, %63 : vector<8x1xf32>
    %cst_24 = arith.constant 0.000000e+00 : f32
    %65 = vector.broadcast %cst_24 : f32 to vector<8x256xf32>
    %66 = arith.select %50, %55, %65 : vector<8x256xi1>, vector<8x256xf32>
    %cst_25 = arith.constant dense<0.000000e+00> : vector<8xf32>
    %67 = vector.multi_reduction <add>, %66, %cst_25 [1] : vector<8x256xf32> to vector<8xf32>
    %68 = vector.shape_cast %67 : vector<8xf32> to vector<8x1xf32>
    %69 = arith.subf %64, %68 : vector<8x1xf32>
    %70 = arith.mulf %9, %17 : vector<8x768xf32>
    %cst_26 = arith.constant dense<0.000000e+00> : vector<8xf32>
    %71 = vector.multi_reduction <add>, %70, %cst_26 [1] : vector<8x768xf32> to vector<8xf32>
    %72 = vector.shape_cast %71 : vector<8xf32> to vector<8x1xf32>
    %cst_27 = arith.constant 1.000000e+00 : f32
    %73 = vector.broadcast %cst_27 : f32 to vector<8x1xf32>
    %74 = arith.subf %73, %72 : vector<8x1xf32>
    %75 = vector.shape_cast %47 : vector<8x1xf32> to vector<1x8x1xf32>
    %cst_28 = arith.constant dense<0.000000e+00> : vector<1xf32>
    %76 = vector.multi_reduction <add>, %75, %cst_28 [1, 2] : vector<1x8x1xf32> to vector<1xf32>
    %77 = vector.shape_cast %76 : vector<1xf32> to vector<1x1x1xf32>
    %78 = vector.extract %77[0, 0, 0] : f32 from vector<1x1x1xf32>
    %cst_29 = arith.constant 1.250000e-01 : f32
    %79 = arith.mulf %cst_29, %78 : f32
    %80 = vector.shape_cast %69 : vector<8x1xf32> to vector<1x8x1xf32>
    %cst_30 = arith.constant dense<0.000000e+00> : vector<1xf32>
    %81 = vector.multi_reduction <add>, %80, %cst_30 [1, 2] : vector<1x8x1xf32> to vector<1xf32>
    %82 = vector.shape_cast %81 : vector<1xf32> to vector<1x1x1xf32>
    %83 = vector.extract %82[0, 0, 0] : f32 from vector<1x1x1xf32>
    %cst_31 = arith.constant 1.250000e-01 : f32
    %84 = arith.mulf %cst_31, %83 : f32
    %85 = arith.addf %79, %84 : f32
    %86 = vector.shape_cast %74 : vector<8x1xf32> to vector<1x8x1xf32>
    %cst_32 = arith.constant dense<0.000000e+00> : vector<1xf32>
    %87 = vector.multi_reduction <add>, %86, %cst_32 [1, 2] : vector<1x8x1xf32> to vector<1xf32>
    %88 = vector.shape_cast %87 : vector<1xf32> to vector<1x1x1xf32>
    %89 = vector.extract %88[0, 0, 0] : f32 from vector<1x1x1xf32>
    %cst_33 = arith.constant 6.250000e-02 : f32
    %90 = arith.mulf %cst_33, %89 : f32
    %91 = arith.addf %85, %90 : f32
    %c0_34 = arith.constant 0 : index
    %c0_35 = arith.constant 0 : index
    %92 = memref.load %arg4[%c0_34, %c0_35] : memref<1x1xf32, #tpu.memory_space<smem>>
    memref.store %91, %arg4[%c0_34, %c0_35] : memref<1x1xf32, #tpu.memory_space<smem>>
    return
  }
}

</mosaic_0001>

<llo_original>
// kernel: tpu_custom_call.1
$region0: #{tpu_custom_call.1}
  #allocation0 [shape = 'u32[]', space=smem, size = 0x4, offset = 0x4, fixed_abs, tag = 'smem constant byte address 0x4 - core index']
  #allocation1 [shape = 'u32[144,128]{1,0:T(1,128)}', space=vmem, size = 0x12000, scoped, tag = 'internal scratch']
  %s0 = inlined_call_operand.hbm [shape: f32[8,768], index: 0, kind: input, shape index: {}]
  %s1 = inlined_call_operand.hbm [shape: f32[8,768], index: 1, kind: input, shape index: {}]
  %s2 = inlined_call_operand.hbm [shape: bf16[768,512], index: 2, kind: input, shape index: {}]
  %s3 = inlined_call_operand.vmem [shape: s32[8,2], index: 3, kind: input, shape index: {}]
  %s4 = inlined_call_operand.hbm [shape: f32[1,1], index: 4, kind: output, shape index: {}]
  %s5 = sld [smem:[#allocation0]]
  $region38: #{tpu_custom_call.1} parent=0
    _
  %s7 = ssub.s32 1, %s5
  %s8 = scalar_select 0, %s7, %s5
  $region1: #{tpu_custom_call.1} parent=0
    #allocation2 [shape = 'u8[24576]{0}', space=vmem, size = 0x6000, scoped, tag = 'input window, operand 0, single buffered']
    #allocation3 [shape = 's32[1]{0}', space=sflag, size = 0x4, scoped, tag = 'scoped memory for tpu_custom_call.1']
    #allocation4 [shape = 's32[1]{0}', space=sflag, size = 0x4, scoped, tag = 'scoped memory for tpu_custom_call.1']
    #allocation5 [shape = 'u8[24576]{0}', space=vmem, size = 0x6000, scoped, tag = 'input window, operand 1, single buffered']
    #allocation6 [shape = 's32[1]{0}', space=sflag, size = 0x4, scoped, tag = 'scoped memory for tpu_custom_call.1']
    #allocation7 [shape = 'u8[786432]{0}', space=vmem, size = 0xc0000, scoped, tag = 'input window, operand 2, single buffered']
    #allocation8 [shape = 'u8[512]{0}', space=smem, size = 0x200, scoped, tag = 'output window, operand 0, single buffered']
    %9 = vsyncpa [#allocation3], 0
    %10 = vsyncpa [#allocation6], 0
    %11 = vsyncpa [#allocation4], 0
    // Predicated region
    $region2: #{tpu_custom_call.1} parent=1 // pred_check
      _
    $region3: #{tpu_custom_call.1} parent=1 // pred_check_branch
      %13 = sbr.rel (0) target = $region5
    $region4: #{tpu_custom_call.1} parent=1 // pred_region
      %s15 = ssub.s32 768, 768
      %16 = vsyncadd [#allocation3], %s15
      %s18 = sshll.u32 [#allocation2], 4
      %s19 = int_to_ptr.vmem [resolvable:$true] %s18
      %21 = dma.hbm_to_vmem [thread:$0]  %s0, 768, %s19, [#allocation3]
    $region5: #{tpu_custom_call.1} parent=1 // pred_fallthru
      _
    // Predicated region
    $region6: #{tpu_custom_call.1} parent=1 // pred_check
      _
    $region7: #{tpu_custom_call.1} parent=1 // pred_check_branch
      %23 = sbr.rel (0) target = $region9
    $region8: #{tpu_custom_call.1} parent=1 // pred_region
      %s25 = ssub.s32 768, 768
      %26 = vsyncadd [#allocation6], %s25
      %s28 = sshll.u32 [#allocation5], 4
      %s29 = int_to_ptr.vmem [resolvable:$true] %s28
      %31 = dma.hbm_to_vmem [thread:$0]  %s1, 768, %s29, [#allocation6]
    $region9: #{tpu_custom_call.1} parent=1 // pred_fallthru
      _
    // Predicated region
    $region10: #{tpu_custom_call.1} parent=1 // pred_check
      _
    $region11: #{tpu_custom_call.1} parent=1 // pred_check_branch
      %33 = sbr.rel (0) target = $region13
    $region12: #{tpu_custom_call.1} parent=1 // pred_region
      %s35 = ssub.s32 24576, 24576
      %36 = vsyncadd [#allocation6], %s35
      %s37 = sshll.u32 [#allocation7], 4
      %s38 = int_to_ptr.vmem [resolvable:$true] %s37
      %43 = dma.hbm_to_vmem [thread:$0]  %s2, 24576, %s38, [#allocation6], 256, 256, 16
    $region13: #{tpu_custom_call.1} parent=1 // pred_fallthru
      _
    // Predicated region
    $region14: #{tpu_custom_call.1} parent=1 // pred_check
      _
    $region15: #{tpu_custom_call.1} parent=1 // pred_check_branch
      %45 = sbr.rel (0) target = $region17
    $region16: #{tpu_custom_call.1} parent=1 // pred_region
      _
    $region17: #{tpu_custom_call.1} parent=1 // pred_fallthru
      _
    // Predicated region
    $region18: #{tpu_custom_call.1} parent=1 // pred_check
      _
    $region19: #{tpu_custom_call.1} parent=1 // pred_check_branch
      %47 = sbr.rel (0) target = $region21
    $region20: #{tpu_custom_call.1} parent=1 // pred_region
      %48 = dma.done [#allocation3], 768
    $region21: #{tpu_custom_call.1} parent=1 // pred_fallthru
      _
    // Predicated region
    $region22: #{tpu_custom_call.1} parent=1 // pred_check
      _
    $region23: #{tpu_custom_call.1} parent=1 // pred_check_branch
      %50 = sbr.rel (0) target = $region25
    $region24: #{tpu_custom_call.1} parent=1 // pred_region
      %51 = dma.done [#allocation6], 768
    $region25: #{tpu_custom_call.1} parent=1 // pred_fallthru
      _
    // Predicated region
    $region26: #{tpu_custom_call.1} parent=1 // pred_check
      _
    $region27: #{tpu_custom_call.1} parent=1 // pred_check_branch
      %53 = sbr.rel (0) target = $region29
    $region28: #{tpu_custom_call.1} parent=1 // pred_region
      %54 = dma.done [#allocation6], 24576
    $region29: #{tpu_custom_call.1} parent=1 // pred_fallthru
      _
    %v55 = vld [vmem:[#allocation2] sm:$0xff]
    %v56 = vld [vmem:[#allocation2 + $0x8] sm:$0xff]
    %v57 = vld [vmem:[#allocation2 + $0x10] sm:$0xff]
    %v58 = vld [vmem:[#allocation2 + $0x18] sm:$0xff]
    %v59 = vld [vmem:[#allocation2 + $0x20] sm:$0xff]
    %v60 = vld [vmem:[#allocation2 + $0x28] sm:$0xff]
    %v61 = vld [vmem:[#allocation5] sm:$0xff]
    %v62 = vld [vmem:[#allocation5 + $0x8] sm:$0xff]
    %v63 = vld [vmem:[#allocation5 + $0x10] sm:$0xff]
    %v64 = vld [vmem:[#allocation5 + $0x18] sm:$0xff]
    %v65 = vld [vmem:[#allocation5 + $0x20] sm:$0xff]
    %v66 = vld [vmem:[#allocation5 + $0x28] sm:$0xff]
    %v67 = vmul.f32 %v55, %v55
    %v68 = vmul.f32 %v56, %v56
    %v69 = vmul.f32 %v57, %v57
    %v70 = vmul.f32 %v58, %v58
    %v71 = vmul.f32 %v59, %v59
    %v72 = vmul.f32 %v60, %v60
    %v73 = vadd.f32 %v67, %v68
    %v74 = vadd.f32 %v73, %v69
    %v75 = vadd.f32 %v74, %v70
    %v76 = vadd.f32 %v75, %v71
    %v77 = vadd.f32 %v76, %v72
    %78 = vadd.xlane.f32.xlu0 %v77
    %v79 = vpop.xlane.xlu0 %78
    %v80 = vadd.f32 %v79, 1e-12
    %v81 = vrsqrt.pop %v80
    %v82 = vmul.f32 %v55, %v81
    %v83 = vmul.f32 %v56, %v81
    %v84 = vmul.f32 %v57, %v81
    %v85 = vmul.f32 %v58, %v81
    %v86 = vmul.f32 %v59, %v81
    %v87 = vmul.f32 %v60, %v81
    %v88 = vmul.f32 %v61, %v61
    %v89 = vmul.f32 %v62, %v62
    %v90 = vmul.f32 %v63, %v63
    %v91 = vmul.f32 %v64, %v64
    %v92 = vmul.f32 %v65, %v65
    %v93 = vmul.f32 %v66, %v66
    %v94 = vadd.f32 %v88, %v89
    %v95 = vadd.f32 %v94, %v90
    %v96 = vadd.f32 %v95, %v91
    %v97 = vadd.f32 %v96, %v92
    %v98 = vadd.f32 %v97, %v93
    %99 = vadd.xlane.f32.xlu0 %v98
    %v100 = vpop.xlane.xlu0 %99
    %v101 = vadd.f32 %v100, 1e-12
    %v102 = vrsqrt.pop %v101
    %v103 = vmul.f32 %v61, %v102
    %v104 = vmul.f32 %v62, %v102
    %v105 = vmul.f32 %v63, %v102
    %v106 = vmul.f32 %v64, %v102
    %v107 = vmul.f32 %v65, %v102
    %v108 = vmul.f32 %v66, %v102
    %v109 = vpack.c.bf16 %v82, %v82
    %v110 = vpack.c.bf16 %v83, %v83
    %v111 = vpack.c.bf16 %v84, %v84
    %v112 = vpack.c.bf16 %v85, %v85
    %v113 = vpack.c.bf16 %v86, %v86
    %v114 = vpack.c.bf16 %v87, %v87
    %v115 = vld [vmem:[#allocation7] sm:$0xff]
    %v116 = vld [vmem:[#allocation7 + $0x10] sm:$0xff]
    %v117 = vld [vmem:[#allocation7 + $0x20] sm:$0xff]
    %v118 = vld [vmem:[#allocation7 + $0x30] sm:$0xff]
    %v119 = vld [vmem:[#allocation7 + $0x40] sm:$0xff]
    %v120 = vld [vmem:[#allocation7 + $0x50] sm:$0xff]
    %v121 = vld [vmem:[#allocation7 + $0x60] sm:$0xff]
    %v122 = vld [vmem:[#allocation7 + $0x70] sm:$0xff]
    %v123 = vld [vmem:[#allocation7 + $0x80] sm:$0xff]
    %v124 = vld [vmem:[#allocation7 + $0x90] sm:$0xff]
    %v125 = vld [vmem:[#allocation7 + $0xa0] sm:$0xff]
    %v126 = vld [vmem:[#allocation7 + $0xb0] sm:$0xff]
    %v127 = vld [vmem:[#allocation7 + $0xc0] sm:$0xff]
    %v128 = vld [vmem:[#allocation7 + $0xd0] sm:$0xff]
    %v129 = vld [vmem:[#allocation7 + $0xe0] sm:$0xff]
    %v130 = vld [vmem:[#allocation7 + $0xf0] sm:$0xff]
    %v131 = vld [vmem:[#allocation7 + $0x100] sm:$0xff]
    %v132 = vld [vmem:[#allocation7 + $0x110] sm:$0xff]
    %v133 = vld [vmem:[#allocation7 + $0x120] sm:$0xff]
    %v134 = vld [vmem:[#allocation7 + $0x130] sm:$0xff]
    %v135 = vld [vmem:[#allocation7 + $0x140] sm:$0xff]
    %v136 = vld [vmem:[#allocation7 + $0x150] sm:$0xff]
    %v137 = vld [vmem:[#allocation7 + $0x160] sm:$0xff]
    %v138 = vld [vmem:[#allocation7 + $0x170] sm:$0xff]
    %v139 = vld [vmem:[#allocation7 + $0x180] sm:$0xff]
    %v140 = vld [vmem:[#allocation7 + $0x190] sm:$0xff]
    %v141 = vld [vmem:[#allocation7 + $0x1a0] sm:$0xff]
    %v142 = vld [vmem:[#allocation7 + $0x1b0] sm:$0xff]
    %v143 = vld [vmem:[#allocation7 + $0x1c0] sm:$0xff]
    %v144 = vld [vmem:[#allocation7 + $0x1d0] sm:$0xff]
    %v145 = vld [vmem:[#allocation7 + $0x1e0] sm:$0xff]
    %v146 = vld [vmem:[#allocation7 + $0x1f0] sm:$0xff]
    %v147 = vld [vmem:[#allocation7 + $0x200] sm:$0xff]
    %v148 = vld [vmem:[#allocation7 + $0x210] sm:$0xff]
    %v149 = vld [vmem:[#allocation7 + $0x220] sm:$0xff]
    %v150 = vld [vmem:[#allocation7 + $0x230] sm:$0xff]
    %v151 = vld [vmem:[#allocation7 + $0x240] sm:$0xff]
    %v152 = vld [vmem:[#allocation7 + $0x250] sm:$0xff]
    %v153 = vld [vmem:[#allocation7 + $0x260] sm:$0xff]
    %v154 = vld [vmem:[#allocation7 + $0x270] sm:$0xff]
    %v155 = vld [vmem:[#allocation7 + $0x280] sm:$0xff]
    %v156 = vld [vmem:[#allocation7 + $0x290] sm:$0xff]
    %v157 = vld [vmem:[#allocation7 + $0x2a0] sm:$0xff]
    %v158 = vld [vmem:[#allocation7 + $0x2b0] sm:$0xff]
    %v159 = vld [vmem:[#allocation7 + $0x2c0] sm:$0xff]
    %v160 = vld [vmem:[#allocation7 + $0x2d0] sm:$0xff]
    %v161 = vld [vmem:[#allocation7 + $0x2e0] sm:$0xff]
    %v162 = vld [vmem:[#allocation7 + $0x2f0] sm:$0xff]
    %v163 = vld [vmem:[#allocation7 + $0x300] sm:$0xff]
    %v164 = vld [vmem:[#allocation7 + $0x310] sm:$0xff]
    %v165 = vld [vmem:[#allocation7 + $0x320] sm:$0xff]
    %v166 = vld [vmem:[#allocation7 + $0x330] sm:$0xff]
    %v167 = vld [vmem:[#allocation7 + $0x340] sm:$0xff]
    %v168 = vld [vmem:[#allocation7 + $0x350] sm:$0xff]
    %v169 = vld [vmem:[#allocation7 + $0x360] sm:$0xff]
    %v170 = vld [vmem:[#allocation7 + $0x370] sm:$0xff]
    %v171 = vld [vmem:[#allocation7 + $0x380] sm:$0xff]
    %v172 = vld [vmem:[#allocation7 + $0x390] sm:$0xff]
    %v173 = vld [vmem:[#allocation7 + $0x3a0] sm:$0xff]
    %v174 = vld [vmem:[#allocation7 + $0x3b0] sm:$0xff]
    %v175 = vld [vmem:[#allocation7 + $0x3c0] sm:$0xff]
    %v176 = vld [vmem:[#allocation7 + $0x3d0] sm:$0xff]
    %v177 = vld [vmem:[#allocation7 + $0x3e0] sm:$0xff]
    %v178 = vld [vmem:[#allocation7 + $0x3f0] sm:$0xff]
    %v179 = vld [vmem:[#allocation7 + $0x400] sm:$0xff]
    %v180 = vld [vmem:[#allocation7 + $0x410] sm:$0xff]
    %v181 = vld [vmem:[#allocation7 + $0x420] sm:$0xff]
    %v182 = vld [vmem:[#allocation7 + $0x430] sm:$0xff]
    %v183 = vld [vmem:[#allocation7 + $0x440] sm:$0xff]
    %v184 = vld [vmem:[#allocation7 + $0x450] sm:$0xff]
    %v185 = vld [vmem:[#allocation7 + $0x460] sm:$0xff]
    %v186 = vld [vmem:[#allocation7 + $0x470] sm:$0xff]
    %v187 = vld [vmem:[#allocation7 + $0x480] sm:$0xff]
    %v188 = vld [vmem:[#allocation7 + $0x490] sm:$0xff]
    %v189 = vld [vmem:[#allocation7 + $0x4a0] sm:$0xff]
    %v190 = vld [vmem:[#allocation7 + $0x4b0] sm:$0xff]
    %v191 = vld [vmem:[#allocation7 + $0x4c0] sm:$0xff]
    %v192 = vld [vmem:[#allocation7 + $0x4d0] sm:$0xff]
    %v193 = vld [vmem:[#allocation7 + $0x4e0] sm:$0xff]
    %v194 = vld [vmem:[#allocation7 + $0x4f0] sm:$0xff]
    %v195 = vld [vmem:[#allocation7 + $0x500] sm:$0xff]
    %v196 = vld [vmem:[#allocation7 + $0x510] sm:$0xff]
    %v197 = vld [vmem:[#allocation7 + $0x520] sm:$0xff]
    %v198 = vld [vmem:[#allocation7 + $0x530] sm:$0xff]
    %v199 = vld [vmem:[#allocation7 + $0x540] sm:$0xff]
    %v200 = vld [vmem:[#allocation7 + $0x550] sm:$0xff]
    %v201 = vld [vmem:[#allocation7 + $0x560] sm:$0xff]
    %v202 = vld [vmem:[#allocation7 + $0x570] sm:$0xff]
    %v203 = vld [vmem:[#allocation7 + $0x580] sm:$0xff]
    %v204 = vld [vmem:[#allocation7 + $0x590] sm:$0xff]
    %v205 = vld [vmem:[#allocation7 + $0x5a0] sm:$0xff]
    %v206 = vld [vmem:[#allocation7 + $0x5b0] sm:$0xff]
    %v207 = vld [vmem:[#allocation7 + $0x5c0] sm:$0xff]
    %v208 = vld [vmem:[#allocation7 + $0x5d0] sm:$0xff]
    %v209 = vld [vmem:[#allocation7 + $0x5e0] sm:$0xff]
    %v210 = vld [vmem:[#allocation7 + $0x5f0] sm:$0xff]
    %v307 = vunpack.c.l.b16 %v115
    %v308 = vunpack.c.h.b16 %v115
    %v309 = vunpack.c.l.b16 %v116
    %v310 = vunpack.c.h.b16 %v116
    %v311 = vunpack.c.l.b16 %v117
    %v312 = vunpack.c.h.b16 %v117
    %v313 = vunpack.c.l.b16 %v118
    %v314 = vunpack.c.h.b16 %v118
    %v315 = vunpack.c.l.b16 %v119
    %v316 = vunpack.c.h.b16 %v119
    %v317 = vunpack.c.l.b16 %v120
    %v318 = vunpack.c.h.b16 %v120
    %v319 = vunpack.c.l.b16 %v121
    %v320 = vunpack.c.h.b16 %v121
    %v321 = vunpack.c.l.b16 %v122
    %v322 = vunpack.c.h.b16 %v122
    %v323 = vunpack.c.l.b16 %v123
    %v324 = vunpack.c.h.b16 %v123
    %v325 = vunpack.c.l.b16 %v124
    %v326 = vunpack.c.h.b16 %v124
    %v327 = vunpack.c.l.b16 %v125
    %v328 = vunpack.c.h.b16 %v125
    %v329 = vunpack.c.l.b16 %v126
    %v330 = vunpack.c.h.b16 %v126
    %v331 = vunpack.c.l.b16 %v127
    %v332 = vunpack.c.h.b16 %v127
    %v333 = vunpack.c.l.b16 %v128
    %v334 = vunpack.c.h.b16 %v128
    %v335 = vunpack.c.l.b16 %v129
    %v336 = vunpack.c.h.b16 %v129
    %v337 = vunpack.c.l.b16 %v130
    %v338 = vunpack.c.h.b16 %v130
    %v339 = vunpack.c.l.b16 %v131
    %v340 = vunpack.c.h.b16 %v131
    %v341 = vunpack.c.l.b16 %v132
    %v342 = vunpack.c.h.b16 %v132
    %v343 = vunpack.c.l.b16 %v133
    %v344 = vunpack.c.h.b16 %v133
    %v345 = vunpack.c.l.b16 %v134
    %v346 = vunpack.c.h.b16 %v134
    %v347 = vunpack.c.l.b16 %v135
    %v348 = vunpack.c.h.b16 %v135
    %v349 = vunpack.c.l.b16 %v136
    %v350 = vunpack.c.h.b16 %v136
    %v351 = vunpack.c.l.b16 %v137
    %v352 = vunpack.c.h.b16 %v137
    %v353 = vunpack.c.l.b16 %v138
    %v354 = vunpack.c.h.b16 %v138
    %v355 = vunpack.c.l.b16 %v139
    %v356 = vunpack.c.h.b16 %v139
    %v357 = vunpack.c.l.b16 %v140
    %v358 = vunpack.c.h.b16 %v140
    %v359 = vunpack.c.l.b16 %v141
    %v360 = vunpack.c.h.b16 %v141
    %v361 = vunpack.c.l.b16 %v142
    %v362 = vunpack.c.h.b16 %v142
    %v363 = vunpack.c.l.b16 %v143
    %v364 = vunpack.c.h.b16 %v143
    %v365 = vunpack.c.l.b16 %v144
    %v366 = vunpack.c.h.b16 %v144
    %v367 = vunpack.c.l.b16 %v145
    %v368 = vunpack.c.h.b16 %v145
    %v369 = vunpack.c.l.b16 %v146
    %v370 = vunpack.c.h.b16 %v146
    %v371 = vunpack.c.l.b16 %v147
    %v372 = vunpack.c.h.b16 %v147
    %v373 = vunpack.c.l.b16 %v148
    %v374 = vunpack.c.h.b16 %v148
    %v375 = vunpack.c.l.b16 %v149
    %v376 = vunpack.c.h.b16 %v149
    %v377 = vunpack.c.l.b16 %v150
    %v378 = vunpack.c.h.b16 %v150
    %v379 = vunpack.c.l.b16 %v151
    %v380 = vunpack.c.h.b16 %v151
    %v381 = vunpack.c.l.b16 %v152
    %v382 = vunpack.c.h.b16 %v152
    %v383 = vunpack.c.l.b16 %v153
    %v384 = vunpack.c.h.b16 %v153
    %v385 = vunpack.c.l.b16 %v154
    %v386 = vunpack.c.h.b16 %v154
    %v387 = vunpack.c.l.b16 %v155
    %v388 = vunpack.c.h.b16 %v155
    %v389 = vunpack.c.l.b16 %v156
    %v390 = vunpack.c.h.b16 %v156
    %v391 = vunpack.c.l.b16 %v157
    %v392 = vunpack.c.h.b16 %v157
    %v393 = vunpack.c.l.b16 %v158
    %v394 = vunpack.c.h.b16 %v158
    %v395 = vunpack.c.l.b16 %v159
    %v396 = vunpack.c.h.b16 %v159
    %v397 = vunpack.c.l.b16 %v160
    %v398 = vunpack.c.h.b16 %v160
    %v399 = vunpack.c.l.b16 %v161
    %v400 = vunpack.c.h.b16 %v161
    %v401 = vunpack.c.l.b16 %v162
    %v402 = vunpack.c.h.b16 %v162
    %v403 = vunpack.c.l.b16 %v163
    %v404 = vunpack.c.h.b16 %v163
    %v405 = vunpack.c.l.b16 %v164
    %v406 = vunpack.c.h.b16 %v164
    %v407 = vunpack.c.l.b16 %v165
    %v408 = vunpack.c.h.b16 %v165
    %v409 = vunpack.c.l.b16 %v166
    %v410 = vunpack.c.h.b16 %v166
    %v411 = vunpack.c.l.b16 %v167
    %v412 = vunpack.c.h.b16 %v167
    %v413 = vunpack.c.l.b16 %v168
    %v414 = vunpack.c.h.b16 %v168
    %v415 = vunpack.c.l.b16 %v169
    %v416 = vunpack.c.h.b16 %v169
    %v417 = vunpack.c.l.b16 %v170
    %v418 = vunpack.c.h.b16 %v170
    %v419 = vunpack.c.l.b16 %v171
    %v420 = vunpack.c.h.b16 %v171
    %v421 = vunpack.c.l.b16 %v172
    %v422 = vunpack.c.h.b16 %v172
    %v423 = vunpack.c.l.b16 %v173
    %v424 = vunpack.c.h.b16 %v173
    %v425 = vunpack.c.l.b16 %v174
    %v426 = vunpack.c.h.b16 %v174
    %v427 = vunpack.c.l.b16 %v175
    %v428 = vunpack.c.h.b16 %v175
    %v429 = vunpack.c.l.b16 %v176
    %v430 = vunpack.c.h.b16 %v176
    %v431 = vunpack.c.l.b16 %v177
    %v432 = vunpack.c.h.b16 %v177
    %v433 = vunpack.c.l.b16 %v178
    %v434 = vunpack.c.h.b16 %v178
    %v435 = vunpack.c.l.b16 %v179
    %v436 = vunpack.c.h.b16 %v179
    %v437 = vunpack.c.l.b16 %v180
    %v438 = vunpack.c.h.b16 %v180
    %v439 = vunpack.c.l.b16 %v181
    %v440 = vunpack.c.h.b16 %v181
    %v441 = vunpack.c.l.b16 %v182
    %v442 = vunpack.c.h.b16 %v182
    %v443 = vunpack.c.l.b16 %v183
    %v444 = vunpack.c.h.b16 %v183
    %v445 = vunpack.c.l.b16 %v184
    %v446 = vunpack.c.h.b16 %v184
    %v447 = vunpack.c.l.b16 %v185
    %v448 = vunpack.c.h.b16 %v185
    %v449 = vunpack.c.l.b16 %v186
    %v450 = vunpack.c.h.b16 %v186
    %v451 = vunpack.c.l.b16 %v187
    %v452 = vunpack.c.h.b16 %v187
    %v453 = vunpack.c.l.b16 %v188
    %v454 = vunpack.c.h.b16 %v188
    %v455 = vunpack.c.l.b16 %v189
    %v456 = vunpack.c.h.b16 %v189
    %v457 = vunpack.c.l.b16 %v190
    %v458 = vunpack.c.h.b16 %v190
    %v459 = vunpack.c.l.b16 %v191
    %v460 = vunpack.c.h.b16 %v191
    %v461 = vunpack.c.l.b16 %v192
    %v462 = vunpack.c.h.b16 %v192
    %v463 = vunpack.c.l.b16 %v193
    %v464 = vunpack.c.h.b16 %v193
    %v465 = vunpack.c.l.b16 %v194
    %v466 = vunpack.c.h.b16 %v194
    %v467 = vunpack.c.l.b16 %v195
    %v468 = vunpack.c.h.b16 %v195
    %v469 = vunpack.c.l.b16 %v196
    %v470 = vunpack.c.h.b16 %v196
    %v471 = vunpack.c.l.b16 %v197
    %v472 = vunpack.c.h.b16 %v197
    %v473 = vunpack.c.l.b16 %v198
    %v474 = vunpack.c.h.b16 %v198
    %v475 = vunpack.c.l.b16 %v199
    %v476 = vunpack.c.h.b16 %v199
    %v477 = vunpack.c.l.b16 %v200
    %v478 = vunpack.c.h.b16 %v200
    %v479 = vunpack.c.l.b16 %v201
    %v480 = vunpack.c.h.b16 %v201
    %v481 = vunpack.c.l.b16 %v202
    %v482 = vunpack.c.h.b16 %v202
    %v483 = vunpack.c.l.b16 %v203
    %v484 = vunpack.c.h.b16 %v203
    %v485 = vunpack.c.l.b16 %v204
    %v486 = vunpack.c.h.b16 %v204
    %v487 = vunpack.c.l.b16 %v205
    %v488 = vunpack.c.h.b16 %v205
    %v489 = vunpack.c.l.b16 %v206
    %v490 = vunpack.c.h.b16 %v206
    %v491 = vunpack.c.l.b16 %v207
    %v492 = vunpack.c.h.b16 %v207
    %v493 = vunpack.c.l.b16 %v208
    %v494 = vunpack.c.h.b16 %v208
    %v495 = vunpack.c.l.b16 %v209
    %v496 = vunpack.c.h.b16 %v209
    %v497 = vunpack.c.l.b16 %v210
    %v498 = vunpack.c.h.b16 %v210
    %v499 = vpack.c.b16 %v309, %v307
    %v500 = vpack.c.b16 %v310, %v308
    %v501 = vpack.c.b16 %v313, %v311
    %v502 = vpack.c.b16 %v314, %v312
    %v503 = vpack.c.b16 %v317, %v315
    %v504 = vpack.c.b16 %v318, %v316
    %v505 = vpack.c.b16 %v321, %v319
    %v506 = vpack.c.b16 %v322, %v320
    %v507 = vpack.c.b16 %v325, %v323
    %v508 = vpack.c.b16 %v326, %v324
    %v509 = vpack.c.b16 %v329, %v327
    %v510 = vpack.c.b16 %v330, %v328
    %v511 = vpack.c.b16 %v333, %v331
    %v512 = vpack.c.b16 %v334, %v332
    %v513 = vpack.c.b16 %v337, %v335
    %v514 = vpack.c.b16 %v338, %v336
    %v515 = vpack.c.b16 %v341, %v339
    %v516 = vpack.c.b16 %v342, %v340
    %v517 = vpack.c.b16 %v345, %v343
    %v518 = vpack.c.b16 %v346, %v344
    %v519 = vpack.c.b16 %v349, %v347
    %v520 = vpack.c.b16 %v350, %v348
    %v521 = vpack.c.b16 %v353, %v351
    %v522 = vpack.c.b16 %v354, %v352
    %v523 = vpack.c.b16 %v357, %v355
    %v524 = vpack.c.b16 %v358, %v356
    %v525 = vpack.c.b16 %v361, %v359
    %v526 = vpack.c.b16 %v362, %v360
    %v527 = vpack.c.b16 %v365, %v363
    %v528 = vpack.c.b16 %v366, %v364
    %v529 = vpack.c.b16 %v369, %v367
    %v530 = vpack.c.b16 %v370, %v368
    %v531 = vpack.c.b16 %v373, %v371
    %v532 = vpack.c.b16 %v374, %v372
    %v533 = vpack.c.b16 %v377, %v375
    %v534 = vpack.c.b16 %v378, %v376
    %v535 = vpack.c.b16 %v381, %v379
    %v536 = vpack.c.b16 %v382, %v380
    %v537 = vpack.c.b16 %v385, %v383
    %v538 = vpack.c.b16 %v386, %v384
    %v539 = vpack.c.b16 %v389, %v387
    %v540 = vpack.c.b16 %v390, %v388
    %v541 = vpack.c.b16 %v393, %v391
    %v542 = vpack.c.b16 %v394, %v392
    %v543 = vpack.c.b16 %v397, %v395
    %v544 = vpack.c.b16 %v398, %v396
    %v545 = vpack.c.b16 %v401, %v399
    %v546 = vpack.c.b16 %v402, %v400
    %v547 = vpack.c.b16 %v405, %v403
    %v548 = vpack.c.b16 %v406, %v404
    %v549 = vpack.c.b16 %v409, %v407
    %v550 = vpack.c.b16 %v410, %v408
    %v551 = vpack.c.b16 %v413, %v411
    %v552 = vpack.c.b16 %v414, %v412
    %v553 = vpack.c.b16 %v417, %v415
    %v554 = vpack.c.b16 %v418, %v416
    %v555 = vpack.c.b16 %v421, %v419
    %v556 = vpack.c.b16 %v422, %v420
    %v557 = vpack.c.b16 %v425, %v423
    %v558 = vpack.c.b16 %v426, %v424
    %v559 = vpack.c.b16 %v429, %v427
    %v560 = vpack.c.b16 %v430, %v428
    %v561 = vpack.c.b16 %v433, %v431
    %v562 = vpack.c.b16 %v434, %v432
    %v563 = vpack.c.b16 %v437, %v435
    %v564 = vpack.c.b16 %v438, %v436
    %v565 = vpack.c.b16 %v441, %v439
    %v566 = vpack.c.b16 %v442, %v440
    %v567 = vpack.c.b16 %v445, %v443
    %v568 = vpack.c.b16 %v446, %v444
    %v569 = vpack.c.b16 %v449, %v447
    %v570 = vpack.c.b16 %v450, %v448
    %v571 = vpack.c.b16 %v453, %v451
    %v572 = vpack.c.b16 %v454, %v452
    %v573 = vpack.c.b16 %v457, %v455
    %v574 = vpack.c.b16 %v458, %v456
    %v575 = vpack.c.b16 %v461, %v459
    %v576 = vpack.c.b16 %v462, %v460
    %v577 = vpack.c.b16 %v465, %v463
    %v578 = vpack.c.b16 %v466, %v464
    %v579 = vpack.c.b16 %v469, %v467
    %v580 = vpack.c.b16 %v470, %v468
    %v581 = vpack.c.b16 %v473, %v471
    %v582 = vpack.c.b16 %v474, %v472
    %v583 = vpack.c.b16 %v477, %v475
    %v584 = vpack.c.b16 %v478, %v476
    %v585 = vpack.c.b16 %v481, %v479
    %v586 = vpack.c.b16 %v482, %v480
    %v587 = vpack.c.b16 %v485, %v483
    %v588 = vpack.c.b16 %v486, %v484
    %v589 = vpack.c.b16 %v489, %v487
    %v590 = vpack.c.b16 %v490, %v488
    %v591 = vpack.c.b16 %v493, %v491
    %v592 = vpack.c.b16 %v494, %v492
    %v593 = vpack.c.b16 %v497, %v495
    %v594 = vpack.c.b16 %v498, %v496
    %691 = vmatprep.subr.bf16.mxu0 %v500
    %692 = vmatpush1.bf16.msra.mxu0 %v499
    %693 = vmatprep.subr.bf16.mxu0 %v502
    %694 = vmatpush1.bf16.msra.mxu0 %v501
    %695 = vmatprep.subr.bf16.mxu0 %v504
    %696 = vmatpush1.bf16.msra.mxu0 %v503
    %697 = vmatprep.subr.bf16.mxu0 %v506
    %698 = vmatpush1.bf16.msra.mxu0 %v505
    %699 = vmatprep.subr.bf16.mxu0 %v508
    %700 = vmatpush1.bf16.msra.mxu0 %v507
    %701 = vmatprep.subr.bf16.mxu0 %v510
    %702 = vmatpush1.bf16.msra.mxu0 %v509
    %703 = vmatprep.subr.bf16.mxu0 %v512
    %704 = vmatpush1.bf16.msra.mxu0 %v511
    %705 = vmatprep.subr.bf16.mxu0 %v514
    %706 = vmatpush1.bf16.msra.mxu0 %v513
    %707 = vmatprep.subr.bf16.mxu0 %v516
    %708 = vmatpush1.bf16.msra.mxu0 %v515
    %709 = vmatprep.subr.bf16.mxu0 %v518
    %710 = vmatpush1.bf16.msra.mxu0 %v517
    %711 = vmatprep.subr.bf16.mxu0 %v520
    %712 = vmatpush1.bf16.msra.mxu0 %v519
    %713 = vmatprep.subr.bf16.mxu0 %v522
    %714 = vmatpush1.bf16.msra.mxu0 %v521
    %715 = vmatprep.subr.bf16.mxu0 %v524
    %716 = vmatpush1.bf16.msra.mxu0 %v523
    %717 = vmatprep.subr.bf16.mxu0 %v526
    %718 = vmatpush1.bf16.msra.mxu0 %v525
    %719 = vmatprep.subr.bf16.mxu0 %v528
    %720 = vmatpush1.bf16.msra.mxu0 %v527
    %721 = vmatprep.subr.bf16.mxu0 %v530
    %722 = vmatpush1.bf16.msra.mxu0 %v529
    %723 = vmatprep.mubr.bf16.mxu0 %v110
    %724 = vmatmul.mubr.bf16.gmra.mrb[0].mxu0 %v109
    %v725 = vpop.f32.mrb[0].mxu0
    %v726 = vadd.f32 0.0, %v725
    %v727 = vpop.f32.mrb[0].mxu0
    %v728 = vadd.f32 0.0, %v727
    %v729 = vpop.f32.mrb[0].mxu0
    %v730 = vpop.f32.mrb[0].mxu0
    %731 = vdwg.mxu0
    %732 = vmatprep.subr.bf16.mxu0 %v532
    %733 = vmatpush1.bf16.msra.mxu0 %v531
    %734 = vmatprep.subr.bf16.mxu0 %v534
    %735 = vmatpush1.bf16.msra.mxu0 %v533
    %736 = vmatprep.subr.bf16.mxu0 %v536
    %737 = vmatpush1.bf16.msra.mxu0 %v535
    %738 = vmatprep.subr.bf16.mxu0 %v538
    %739 = vmatpush1.bf16.msra.mxu0 %v537
    %740 = vmatprep.subr.bf16.mxu0 %v540
    %741 = vmatpush1.bf16.msra.mxu0 %v539
    %742 = vmatprep.subr.bf16.mxu0 %v542
    %743 = vmatpush1.bf16.msra.mxu0 %v541
    %744 = vmatprep.subr.bf16.mxu0 %v544
    %745 = vmatpush1.bf16.msra.mxu0 %v543
    %746 = vmatprep.subr.bf16.mxu0 %v546
    %747 = vmatpush1.bf16.msra.mxu0 %v545
    %748 = vmatprep.subr.bf16.mxu0 %v548
    %749 = vmatpush1.bf16.msra.mxu0 %v547
    %750 = vmatprep.subr.bf16.mxu0 %v550
    %751 = vmatpush1.bf16.msra.mxu0 %v549
    %752 = vmatprep.subr.bf16.mxu0 %v552
    %753 = vmatpush1.bf16.msra.mxu0 %v551
    %754 = vmatprep.subr.bf16.mxu0 %v554
    %755 = vmatpush1.bf16.msra.mxu0 %v553
    %756 = vmatprep.subr.bf16.mxu0 %v556
    %757 = vmatpush1.bf16.msra.mxu0 %v555
    %758 = vmatprep.subr.bf16.mxu0 %v558
    %759 = vmatpush1.bf16.msra.mxu0 %v557
    %760 = vmatprep.subr.bf16.mxu0 %v560
    %761 = vmatpush1.bf16.msra.mxu0 %v559
    %762 = vmatprep.subr.bf16.mxu0 %v562
    %763 = vmatpush1.bf16.msra.mxu0 %v561
    %764 = vmatprep.mubr.bf16.mxu0 %v112
    %765 = vmatmul.mubr.bf16.gmra.mrb[0].mxu0 %v111
    %v766 = vpop.f32.mrb[0].mxu0
    %v767 = vadd.f32 %v726, %v766
    %v768 = vpop.f32.mrb[0].mxu0
    %v769 = vadd.f32 %v728, %v768
    %v770 = vpop.f32.mrb[0].mxu0
    %v771 = vpop.f32.mrb[0].mxu0
    %772 = vdwg.mxu0
    %773 = vmatprep.subr.bf16.mxu0 %v564
    %774 = vmatpush1.bf16.msra.mxu0 %v563
    %775 = vmatprep.subr.bf16.mxu0 %v566
    %776 = vmatpush1.bf16.msra.mxu0 %v565
    %777 = vmatprep.subr.bf16.mxu0 %v568
    %778 = vmatpush1.bf16.msra.mxu0 %v567
    %779 = vmatprep.subr.bf16.mxu0 %v570
    %780 = vmatpush1.bf16.msra.mxu0 %v569
    %781 = vmatprep.subr.bf16.mxu0 %v572
    %782 = vmatpush1.bf16.msra.mxu0 %v571
    %783 = vmatprep.subr.bf16.mxu0 %v574
    %784 = vmatpush1.bf16.msra.mxu0 %v573
    %785 = vmatprep.subr.bf16.mxu0 %v576
    %786 = vmatpush1.bf16.msra.mxu0 %v575
    %787 = vmatprep.subr.bf16.mxu0 %v578
    %788 = vmatpush1.bf16.msra.mxu0 %v577
    %789 = vmatprep.subr.bf16.mxu0 %v580
    %790 = vmatpush1.bf16.msra.mxu0 %v579
    %791 = vmatprep.subr.bf16.mxu0 %v582
    %792 = vmatpush1.bf16.msra.mxu0 %v581
    %793 = vmatprep.subr.bf16.mxu0 %v584
    %794 = vmatpush1.bf16.msra.mxu0 %v583
    %795 = vmatprep.subr.bf16.mxu0 %v586
    %796 = vmatpush1.bf16.msra.mxu0 %v585
    %797 = vmatprep.subr.bf16.mxu0 %v588
    %798 = vmatpush1.bf16.msra.mxu0 %v587
    %799 = vmatprep.subr.bf16.mxu0 %v590
    %800 = vmatpush1.bf16.msra.mxu0 %v589
    %801 = vmatprep.subr.bf16.mxu0 %v592
    %802 = vmatpush1.bf16.msra.mxu0 %v591
    %803 = vmatprep.subr.bf16.mxu0 %v594
    %804 = vmatpush1.bf16.msra.mxu0 %v593
    %805 = vmatprep.mubr.bf16.mxu0 %v114
    %806 = vmatmul.mubr.bf16.gmra.mrb[0].mxu0 %v113
    %v807 = vpop.f32.mrb[0].mxu0
    %v808 = vadd.f32 %v767, %v807
    %v809 = vpop.f32.mrb[0].mxu0
    %v810 = vadd.f32 %v769, %v809
    %v811 = vpop.f32.mrb[0].mxu0
    %v812 = vpop.f32.mrb[0].mxu0
    %813 = vdwg.mxu0
    %v814 = vpack.c.bf16 %v103, %v103
    %v815 = vpack.c.bf16 %v104, %v104
    %v816 = vpack.c.bf16 %v105, %v105
    %v817 = vpack.c.bf16 %v106, %v106
    %v818 = vpack.c.bf16 %v107, %v107
    %v819 = vpack.c.bf16 %v108, %v108
    %v820 = vld [vmem:[#allocation7 + $0x8] sm:$0xff]
    %v821 = vld [vmem:[#allocation7 + $0x18] sm:$0xff]
    %v822 = vld [vmem:[#allocation7 + $0x28] sm:$0xff]
    %v823 = vld [vmem:[#allocation7 + $0x38] sm:$0xff]
    %v824 = vld [vmem:[#allocation7 + $0x48] sm:$0xff]
    %v825 = vld [vmem:[#allocation7 + $0x58] sm:$0xff]
    %v826 = vld [vmem:[#allocation7 + $0x68] sm:$0xff]
    %v827 = vld [vmem:[#allocation7 + $0x78] sm:$0xff]
    %v828 = vld [vmem:[#allocation7 + $0x88] sm:$0xff]
    %v829 = vld [vmem:[#allocation7 + $0x98] sm:$0xff]
    %v830 = vld [vmem:[#allocation7 + $0xa8] sm:$0xff]
    %v831 = vld [vmem:[#allocation7 + $0xb8] sm:$0xff]
    %v832 = vld [vmem:[#allocation7 + $0xc8] sm:$0xff]
    %v833 = vld [vmem:[#allocation7 + $0xd8] sm:$0xff]
    %v834 = vld [vmem:[#allocation7 + $0xe8] sm:$0xff]
    %v835 = vld [vmem:[#allocation7 + $0xf8] sm:$0xff]
    %v836 = vld [vmem:[#allocation7 + $0x108] sm:$0xff]
    %v837 = vld [vmem:[#allocation7 + $0x118] sm:$0xff]
    %v838 = vld [vmem:[#allocation7 + $0x128] sm:$0xff]
    %v839 = vld [vmem:[#allocation7 + $0x138] sm:$0xff]
    %v840 = vld [vmem:[#allocation7 + $0x148] sm:$0xff]
    %v841 = vld [vmem:[#allocation7 + $0x158] sm:$0xff]
    %v842 = vld [vmem:[#allocation7 + $0x168] sm:$0xff]
    %v843 = vld [vmem:[#allocation7 + $0x178] sm:$0xff]
    %v844 = vld [vmem:[#allocation7 + $0x188] sm:$0xff]
    %v845 = vld [vmem:[#allocation7 + $0x198] sm:$0xff]
    %v846 = vld [vmem:[#allocation7 + $0x1a8] sm:$0xff]
    %v847 = vld [vmem:[#allocation7 + $0x1b8] sm:$0xff]
    %v848 = vld [vmem:[#allocation7 + $0x1c8] sm:$0xff]
    %v849 = vld [vmem:[#allocation7 + $0x1d8] sm:$0xff]
    %v850 = vld [vmem:[#allocation7 + $0x1e8] sm:$0xff]
    %v851 = vld [vmem:[#allocation7 + $0x1f8] sm:$0xff]
    %v852 = vld [vmem:[#allocation7 + $0x208] sm:$0xff]
    %v853 = vld [vmem:[#allocation7 + $0x218] sm:$0xff]
    %v854 = vld [vmem:[#allocation7 + $0x228] sm:$0xff]
    %v855 = vld [vmem:[#allocation7 + $0x238] sm:$0xff]
    %v856 = vld [vmem:[#allocation7 + $0x248] sm:$0xff]
    %v857 = vld [vmem:[#allocation7 + $0x258] sm:$0xff]
    %v858 = vld [vmem:[#allocation7 + $0x268] sm:$0xff]
    %v859 = vld [vmem:[#allocation7 + $0x278] sm:$0xff]
    %v860 = vld [vmem:[#allocation7 + $0x288] sm:$0xff]
    %v861 = vld [vmem:[#allocation7 + $0x298] sm:$0xff]
    %v862 = vld [vmem:[#allocation7 + $0x2a8] sm:$0xff]
    %v863 = vld [vmem:[#allocation7 + $0x2b8] sm:$0xff]
    %v864 = vld [vmem:[#allocation7 + $0x2c8] sm:$0xff]
    %v865 = vld [vmem:[#allocation7 + $0x2d8] sm:$0xff]
    %v866 = vld [vmem:[#allocation7 + $0x2e8] sm:$0xff]
    %v867 = vld [vmem:[#allocation7 + $0x2f8] sm:$0xff]
    %v868 = vld [vmem:[#allocation7 + $0x308] sm:$0xff]
    %v869 = vld [vmem:[#allocation7 + $0x318] sm:$0xff]
    %v870 = vld [vmem:[#allocation7 + $0x328] sm:$0xff]
    %v871 = vld [vmem:[#allocation7 + $0x338] sm:$0xff]
    %v872 = vld [vmem:[#allocation7 + $0x348] sm:$0xff]
    %v873 = vld [vmem:[#allocation7 + $0x358] sm:$0xff]
    %v874 = vld [vmem:[#allocation7 + $0x368] sm:$0xff]
    %v875 = vld [vmem:[#allocation7 + $0x378] sm:$0xff]
    %v876 = vld [vmem:[#allocation7 + $0x388] sm:$0xff]
    %v877 = vld [vmem:[#allocation7 + $0x398] sm:$0xff]
    %v878 = vld [vmem:[#allocation7 + $0x3a8] sm:$0xff]
    %v879 = vld [vmem:[#allocation7 + $0x3b8] sm:$0xff]
    %v880 = vld [vmem:[#allocation7 + $0x3c8] sm:$0xff]
    %v881 = vld [vmem:[#allocation7 + $0x3d8] sm:$0xff]
    %v882 = vld [vmem:[#allocation7 + $0x3e8] sm:$0xff]
    %v883 = vld [vmem:[#allocation7 + $0x3f8] sm:$0xff]
    %v884 = vld [vmem:[#allocation7 + $0x408] sm:$0xff]
    %v885 = vld [vmem:[#allocation7 + $0x418] sm:$0xff]
    %v886 = vld [vmem:[#allocation7 + $0x428] sm:$0xff]
    %v887 = vld [vmem:[#allocation7 + $0x438] sm:$0xff]
    %v888 = vld [vmem:[#allocation7 + $0x448] sm:$0xff]
    %v889 = vld [vmem:[#allocation7 + $0x458] sm:$0xff]
    %v890 = vld [vmem:[#allocation7 + $0x468] sm:$0xff]
    %v891 = vld [vmem:[#allocation7 + $0x478] sm:$0xff]
    %v892 = vld [vmem:[#allocation7 + $0x488] sm:$0xff]
    %v893 = vld [vmem:[#allocation7 + $0x498] sm:$0xff]
    %v894 = vld [vmem:[#allocation7 + $0x4a8] sm:$0xff]
    %v895 = vld [vmem:[#allocation7 + $0x4b8] sm:$0xff]
    %v896 = vld [vmem:[#allocation7 + $0x4c8] sm:$0xff]
    %v897 = vld [vmem:[#allocation7 + $0x4d8] sm:$0xff]
    %v898 = vld [vmem:[#allocation7 + $0x4e8] sm:$0xff]
    %v899 = vld [vmem:[#allocation7 + $0x4f8] sm:$0xff]
    %v900 = vld [vmem:[#allocation7 + $0x508] sm:$0xff]
    %v901 = vld [vmem:[#allocation7 + $0x518] sm:$0xff]
    %v902 = vld [vmem:[#allocation7 + $0x528] sm:$0xff]
    %v903 = vld [vmem:[#allocation7 + $0x538] sm:$0xff]
    %v904 = vld [vmem:[#allocation7 + $0x548] sm:$0xff]
    %v905 = vld [vmem:[#allocation7 + $0x558] sm:$0xff]
    %v906 = vld [vmem:[#allocation7 + $0x568] sm:$0xff]
    %v907 = vld [vmem:[#allocation7 + $0x578] sm:$0xff]
    %v908 = vld [vmem:[#allocation7 + $0x588] sm:$0xff]
    %v909 = vld [vmem:[#allocation7 + $0x598] sm:$0xff]
    %v910 = vld [vmem:[#allocation7 + $0x5a8] sm:$0xff]
    %v911 = vld [vmem:[#allocation7 + $0x5b8] sm:$0xff]
    %v912 = vld [vmem:[#allocation7 + $0x5c8] sm:$0xff]
    %v913 = vld [vmem:[#allocation7 + $0x5d8] sm:$0xff]
    %v914 = vld [vmem:[#allocation7 + $0x5e8] sm:$0xff]
    %v915 = vld [vmem:[#allocation7 + $0x5f8] sm:$0xff]
    %v1012 = vunpack.c.l.b16 %v820
    %v1013 = vunpack.c.h.b16 %v820
    %v1014 = vunpack.c.l.b16 %v821
    %v1015 = vunpack.c.h.b16 %v821
    %v1016 = vunpack.c.l.b16 %v822
    %v1017 = vunpack.c.h.b16 %v822
    %v1018 = vunpack.c.l.b16 %v823
    %v1019 = vunpack.c.h.b16 %v823
    %v1020 = vunpack.c.l.b16 %v824
    %v1021 = vunpack.c.h.b16 %v824
    %v1022 = vunpack.c.l.b16 %v825
    %v1023 = vunpack.c.h.b16 %v825
    %v1024 = vunpack.c.l.b16 %v826
    %v1025 = vunpack.c.h.b16 %v826
    %v1026 = vunpack.c.l.b16 %v827
    %v1027 = vunpack.c.h.b16 %v827
    %v1028 = vunpack.c.l.b16 %v828
    %v1029 = vunpack.c.h.b16 %v828
    %v1030 = vunpack.c.l.b16 %v829
    %v1031 = vunpack.c.h.b16 %v829
    %v1032 = vunpack.c.l.b16 %v830
    %v1033 = vunpack.c.h.b16 %v830
    %v1034 = vunpack.c.l.b16 %v831
    %v1035 = vunpack.c.h.b16 %v831
    %v1036 = vunpack.c.l.b16 %v832
    %v1037 = vunpack.c.h.b16 %v832
    %v1038 = vunpack.c.l.b16 %v833
    %v1039 = vunpack.c.h.b16 %v833
    %v1040 = vunpack.c.l.b16 %v834
    %v1041 = vunpack.c.h.b16 %v834
    %v1042 = vunpack.c.l.b16 %v835
    %v1043 = vunpack.c.h.b16 %v835
    %v1044 = vunpack.c.l.b16 %v836
    %v1045 = vunpack.c.h.b16 %v836
    %v1046 = vunpack.c.l.b16 %v837
    %v1047 = vunpack.c.h.b16 %v837
    %v1048 = vunpack.c.l.b16 %v838
    %v1049 = vunpack.c.h.b16 %v838
    %v1050 = vunpack.c.l.b16 %v839
    %v1051 = vunpack.c.h.b16 %v839
    %v1052 = vunpack.c.l.b16 %v840
    %v1053 = vunpack.c.h.b16 %v840
    %v1054 = vunpack.c.l.b16 %v841
    %v1055 = vunpack.c.h.b16 %v841
    %v1056 = vunpack.c.l.b16 %v842
    %v1057 = vunpack.c.h.b16 %v842
    %v1058 = vunpack.c.l.b16 %v843
    %v1059 = vunpack.c.h.b16 %v843
    %v1060 = vunpack.c.l.b16 %v844
    %v1061 = vunpack.c.h.b16 %v844
    %v1062 = vunpack.c.l.b16 %v845
    %v1063 = vunpack.c.h.b16 %v845
    %v1064 = vunpack.c.l.b16 %v846
    %v1065 = vunpack.c.h.b16 %v846
    %v1066 = vunpack.c.l.b16 %v847
    %v1067 = vunpack.c.h.b16 %v847
    %v1068 = vunpack.c.l.b16 %v848
    %v1069 = vunpack.c.h.b16 %v848
    %v1070 = vunpack.c.l.b16 %v849
    %v1071 = vunpack.c.h.b16 %v849
    %v1072 = vunpack.c.l.b16 %v850
    %v1073 = vunpack.c.h.b16 %v850
    %v1074 = vunpack.c.l.b16 %v851
    %v1075 = vunpack.c.h.b16 %v851
    %v1076 = vunpack.c.l.b16 %v852
    %v1077 = vunpack.c.h.b16 %v852
    %v1078 = vunpack.c.l.b16 %v853
    %v1079 = vunpack.c.h.b16 %v853
    %v1080 = vunpack.c.l.b16 %v854
    %v1081 = vunpack.c.h.b16 %v854
    %v1082 = vunpack.c.l.b16 %v855
    %v1083 = vunpack.c.h.b16 %v855
    %v1084 = vunpack.c.l.b16 %v856
    %v1085 = vunpack.c.h.b16 %v856
    %v1086 = vunpack.c.l.b16 %v857
    %v1087 = vunpack.c.h.b16 %v857
    %v1088 = vunpack.c.l.b16 %v858
    %v1089 = vunpack.c.h.b16 %v858
    %v1090 = vunpack.c.l.b16 %v859
    %v1091 = vunpack.c.h.b16 %v859
    %v1092 = vunpack.c.l.b16 %v860
    %v1093 = vunpack.c.h.b16 %v860
    %v1094 = vunpack.c.l.b16 %v861
    %v1095 = vunpack.c.h.b16 %v861
    %v1096 = vunpack.c.l.b16 %v862
    %v1097 = vunpack.c.h.b16 %v862
    %v1098 = vunpack.c.l.b16 %v863
    %v1099 = vunpack.c.h.b16 %v863
    %v1100 = vunpack.c.l.b16 %v864
    %v1101 = vunpack.c.h.b16 %v864
    %v1102 = vunpack.c.l.b16 %v865
    %v1103 = vunpack.c.h.b16 %v865
    %v1104 = vunpack.c.l.b16 %v866
    %v1105 = vunpack.c.h.b16 %v866
    %v1106 = vunpack.c.l.b16 %v867
    %v1107 = vunpack.c.h.b16 %v867
    %v1108 = vunpack.c.l.b16 %v868
    %v1109 = vunpack.c.h.b16 %v868
    %v1110 = vunpack.c.l.b16 %v869
    %v1111 = vunpack.c.h.b16 %v869
    %v1112 = vunpack.c.l.b16 %v870
    %v1113 = vunpack.c.h.b16 %v870
    %v1114 = vunpack.c.l.b16 %v871
    %v1115 = vunpack.c.h.b16 %v871
    %v1116 = vunpack.c.l.b16 %v872
    %v1117 = vunpack.c.h.b16 %v872
    %v1118 = vunpack.c.l.b16 %v873
    %v1119 = vunpack.c.h.b16 %v873
    %v1120 = vunpack.c.l.b16 %v874
    %v1121 = vunpack.c.h.b16 %v874
    %v1122 = vunpack.c.l.b16 %v875
    %v1123 = vunpack.c.h.b16 %v875
    %v1124 = vunpack.c.l.b16 %v876
    %v1125 = vunpack.c.h.b16 %v876
    %v1126 = vunpack.c.l.b16 %v877
    %v1127 = vunpack.c.h.b16 %v877
    %v1128 = vunpack.c.l.b16 %v878
    %v1129 = vunpack.c.h.b16 %v878
    %v1130 = vunpack.c.l.b16 %v879
    %v1131 = vunpack.c.h.b16 %v879
    %v1132 = vunpack.c.l.b16 %v880
    %v1133 = vunpack.c.h.b16 %v880
    %v1134 = vunpack.c.l.b16 %v881
    %v1135 = vunpack.c.h.b16 %v881
    %v1136 = vunpack.c.l.b16 %v882
    %v1137 = vunpack.c.h.b16 %v882
    %v1138 = vunpack.c.l.b16 %v883
    %v1139 = vunpack.c.h.b16 %v883
    %v1140 = vunpack.c.l.b16 %v884
    %v1141 = vunpack.c.h.b16 %v884
    %v1142 = vunpack.c.l.b16 %v885
    %v1143 = vunpack.c.h.b16 %v885
    %v1144 = vunpack.c.l.b16 %v886
    %v1145 = vunpack.c.h.b16 %v886
    %v1146 = vunpack.c.l.b16 %v887
    %v1147 = vunpack.c.h.b16 %v887
    %v1148 = vunpack.c.l.b16 %v888
    %v1149 = vunpack.c.h.b16 %v888
    %v1150 = vunpack.c.l.b16 %v889
    %v1151 = vunpack.c.h.b16 %v889
    %v1152 = vunpack.c.l.b16 %v890
    %v1153 = vunpack.c.h.b16 %v890
    %v1154 = vunpack.c.l.b16 %v891
    %v1155 = vunpack.c.h.b16 %v891
    %v1156 = vunpack.c.l.b16 %v892
    %v1157 = vunpack.c.h.b16 %v892
    %v1158 = vunpack.c.l.b16 %v893
    %v1159 = vunpack.c.h.b16 %v893
    %v1160 = vunpack.c.l.b16 %v894
    %v1161 = vunpack.c.h.b16 %v894
    %v1162 = vunpack.c.l.b16 %v895
    %v1163 = vunpack.c.h.b16 %v895
    %v1164 = vunpack.c.l.b16 %v896
    %v1165 = vunpack.c.h.b16 %v896
    %v1166 = vunpack.c.l.b16 %v897
    %v1167 = vunpack.c.h.b16 %v897
    %v1168 = vunpack.c.l.b16 %v898
    %v1169 = vunpack.c.h.b16 %v898
    %v1170 = vunpack.c.l.b16 %v899
    %v1171 = vunpack.c.h.b16 %v899
    %v1172 = vunpack.c.l.b16 %v900
    %v1173 = vunpack.c.h.b16 %v900
    %v1174 = vunpack.c.l.b16 %v901
    %v1175 = vunpack.c.h.b16 %v901
    %v1176 = vunpack.c.l.b16 %v902
    %v1177 = vunpack.c.h.b16 %v902
    %v1178 = vunpack.c.l.b16 %v903
    %v1179 = vunpack.c.h.b16 %v903
    %v1180 = vunpack.c.l.b16 %v904
    %v1181 = vunpack.c.h.b16 %v904
    %v1182 = vunpack.c.l.b16 %v905
    %v1183 = vunpack.c.h.b16 %v905
    %v1184 = vunpack.c.l.b16 %v906
    %v1185 = vunpack.c.h.b16 %v906
    %v1186 = vunpack.c.l.b16 %v907
    %v1187 = vunpack.c.h.b16 %v907
    %v1188 = vunpack.c.l.b16 %v908
    %v1189 = vunpack.c.h.b16 %v908
    %v1190 = vunpack.c.l.b16 %v909
    %v1191 = vunpack.c.h.b16 %v909
    %v1192 = vunpack.c.l.b16 %v910
    %v1193 = vunpack.c.h.b16 %v910
    %v1194 = vunpack.c.l.b16 %v911
    %v1195 = vunpack.c.h.b16 %v911
    %v1196 = vunpack.c.l.b16 %v912
    %v1197 = vunpack.c.h.b16 %v912
    %v1198 = vunpack.c.l.b16 %v913
    %v1199 = vunpack.c.h.b16 %v913
    %v1200 = vunpack.c.l.b16 %v914
    %v1201 = vunpack.c.h.b16 %v914
    %v1202 = vunpack.c.l.b16 %v915
    %v1203 = vunpack.c.h.b16 %v915
    %v1204 = vpack.c.b16 %v1014, %v1012
    %v1205 = vpack.c.b16 %v1015, %v1013
    %v1206 = vpack.c.b16 %v1018, %v1016
    %v1207 = vpack.c.b16 %v1019, %v1017
    %v1208 = vpack.c.b16 %v1022, %v1020
    %v1209 = vpack.c.b16 %v1023, %v1021
    %v1210 = vpack.c.b16 %v1026, %v1024
    %v1211 = vpack.c.b16 %v1027, %v1025
    %v1212 = vpack.c.b16 %v1030, %v1028
    %v1213 = vpack.c.b16 %v1031, %v1029
    %v1214 = vpack.c.b16 %v1034, %v1032
    %v1215 = vpack.c.b16 %v1035, %v1033
    %v1216 = vpack.c.b16 %v1038, %v1036
    %v1217 = vpack.c.b16 %v1039, %v1037
    %v1218 = vpack.c.b16 %v1042, %v1040
    %v1219 = vpack.c.b16 %v1043, %v1041
    %v1220 = vpack.c.b16 %v1046, %v1044
    %v1221 = vpack.c.b16 %v1047, %v1045
    %v1222 = vpack.c.b16 %v1050, %v1048
    %v1223 = vpack.c.b16 %v1051, %v1049
    %v1224 = vpack.c.b16 %v1054, %v1052
    %v1225 = vpack.c.b16 %v1055, %v1053
    %v1226 = vpack.c.b16 %v1058, %v1056
    %v1227 = vpack.c.b16 %v1059, %v1057
    %v1228 = vpack.c.b16 %v1062, %v1060
    %v1229 = vpack.c.b16 %v1063, %v1061
    %v1230 = vpack.c.b16 %v1066, %v1064
    %v1231 = vpack.c.b16 %v1067, %v1065
    %v1232 = vpack.c.b16 %v1070, %v1068
    %v1233 = vpack.c.b16 %v1071, %v1069
    %v1234 = vpack.c.b16 %v1074, %v1072
    %v1235 = vpack.c.b16 %v1075, %v1073
    %v1236 = vpack.c.b16 %v1078, %v1076
    %v1237 = vpack.c.b16 %v1079, %v1077
    %v1238 = vpack.c.b16 %v1082, %v1080
    %v1239 = vpack.c.b16 %v1083, %v1081
    %v1240 = vpack.c.b16 %v1086, %v1084
    %v1241 = vpack.c.b16 %v1087, %v1085
    %v1242 = vpack.c.b16 %v1090, %v1088
    %v1243 = vpack.c.b16 %v1091, %v1089
    %v1244 = vpack.c.b16 %v1094, %v1092
    %v1245 = vpack.c.b16 %v1095, %v1093
    %v1246 = vpack.c.b16 %v1098, %v1096
    %v1247 = vpack.c.b16 %v1099, %v1097
    %v1248 = vpack.c.b16 %v1102, %v1100
    %v1249 = vpack.c.b16 %v1103, %v1101
    %v1250 = vpack.c.b16 %v1106, %v1104
    %v1251 = vpack.c.b16 %v1107, %v1105
    %v1252 = vpack.c.b16 %v1110, %v1108
    %v1253 = vpack.c.b16 %v1111, %v1109
    %v1254 = vpack.c.b16 %v1114, %v1112
    %v1255 = vpack.c.b16 %v1115, %v1113
    %v1256 = vpack.c.b16 %v1118, %v1116
    %v1257 = vpack.c.b16 %v1119, %v1117
    %v1258 = vpack.c.b16 %v1122, %v1120
    %v1259 = vpack.c.b16 %v1123, %v1121
    %v1260 = vpack.c.b16 %v1126, %v1124
    %v1261 = vpack.c.b16 %v1127, %v1125
    %v1262 = vpack.c.b16 %v1130, %v1128
    %v1263 = vpack.c.b16 %v1131, %v1129
    %v1264 = vpack.c.b16 %v1134, %v1132
    %v1265 = vpack.c.b16 %v1135, %v1133
    %v1266 = vpack.c.b16 %v1138, %v1136
    %v1267 = vpack.c.b16 %v1139, %v1137
    %v1268 = vpack.c.b16 %v1142, %v1140
    %v1269 = vpack.c.b16 %v1143, %v1141
    %v1270 = vpack.c.b16 %v1146, %v1144
    %v1271 = vpack.c.b16 %v1147, %v1145
    %v1272 = vpack.c.b16 %v1150, %v1148
    %v1273 = vpack.c.b16 %v1151, %v1149
    %v1274 = vpack.c.b16 %v1154, %v1152
    %v1275 = vpack.c.b16 %v1155, %v1153
    %v1276 = vpack.c.b16 %v1158, %v1156
    %v1277 = vpack.c.b16 %v1159, %v1157
    %v1278 = vpack.c.b16 %v1162, %v1160
    %v1279 = vpack.c.b16 %v1163, %v1161
    %v1280 = vpack.c.b16 %v1166, %v1164
    %v1281 = vpack.c.b16 %v1167, %v1165
    %v1282 = vpack.c.b16 %v1170, %v1168
    %v1283 = vpack.c.b16 %v1171, %v1169
    %v1284 = vpack.c.b16 %v1174, %v1172
    %v1285 = vpack.c.b16 %v1175, %v1173
    %v1286 = vpack.c.b16 %v1178, %v1176
    %v1287 = vpack.c.b16 %v1179, %v1177
    %v1288 = vpack.c.b16 %v1182, %v1180
    %v1289 = vpack.c.b16 %v1183, %v1181
    %v1290 = vpack.c.b16 %v1186, %v1184
    %v1291 = vpack.c.b16 %v1187, %v1185
    %v1292 = vpack.c.b16 %v1190, %v1188
    %v1293 = vpack.c.b16 %v1191, %v1189
    %v1294 = vpack.c.b16 %v1194, %v1192
    %v1295 = vpack.c.b16 %v1195, %v1193
    %v1296 = vpack.c.b16 %v1198, %v1196
    %v1297 = vpack.c.b16 %v1199, %v1197
    %v1298 = vpack.c.b16 %v1202, %v1200
    %v1299 = vpack.c.b16 %v1203, %v1201
    %1396 = vmatprep.subr.bf16.mxu0 %v1205
    %1397 = vmatpush1.bf16.msra.mxu0 %v1204
    %1398 = vmatprep.subr.bf16.mxu0 %v1207
    %1399 = vmatpush1.bf16.msra.mxu0 %v1206
    %1400 = vmatprep.subr.bf16.mxu0 %v1209
    %1401 = vmatpush1.bf16.msra.mxu0 %v1208
    %1402 = vmatprep.subr.bf16.mxu0 %v1211
    %1403 = vmatpush1.bf16.msra.mxu0 %v1210
    %1404 = vmatprep.subr.bf16.mxu0 %v1213
    %1405 = vmatpush1.bf16.msra.mxu0 %v1212
    %1406 = vmatprep.subr.bf16.mxu0 %v1215
    %1407 = vmatpush1.bf16.msra.mxu0 %v1214
    %1408 = vmatprep.subr.bf16.mxu0 %v1217
    %1409 = vmatpush1.bf16.msra.mxu0 %v1216
    %1410 = vmatprep.subr.bf16.mxu0 %v1219
    %1411 = vmatpush1.bf16.msra.mxu0 %v1218
    %1412 = vmatprep.subr.bf16.mxu0 %v1221
    %1413 = vmatpush1.bf16.msra.mxu0 %v1220
    %1414 = vmatprep.subr.bf16.mxu0 %v1223
    %1415 = vmatpush1.bf16.msra.mxu0 %v1222
    %1416 = vmatprep.subr.bf16.mxu0 %v1225
    %1417 = vmatpush1.bf16.msra.mxu0 %v1224
    %1418 = vmatprep.subr.bf16.mxu0 %v1227
    %1419 = vmatpush1.bf16.msra.mxu0 %v1226
    %1420 = vmatprep.subr.bf16.mxu0 %v1229
    %1421 = vmatpush1.bf16.msra.mxu0 %v1228
    %1422 = vmatprep.subr.bf16.mxu0 %v1231
    %1423 = vmatpush1.bf16.msra.mxu0 %v1230
    %1424 = vmatprep.subr.bf16.mxu0 %v1233
    %1425 = vmatpush1.bf16.msra.mxu0 %v1232
    %1426 = vmatprep.subr.bf16.mxu0 %v1235
    %1427 = vmatpush1.bf16.msra.mxu0 %v1234
    %1428 = vmatprep.mubr.bf16.mxu0 %v815
    %1429 = vmatmul.mubr.bf16.gmra.mrb[0].mxu0 %v814
    %v1430 = vpop.f32.mrb[0].mxu0
    %v1431 = vadd.f32 0.0, %v1430
    %v1432 = vpop.f32.mrb[0].mxu0
    %v1433 = vadd.f32 0.0, %v1432
    %v1434 = vpop.f32.mrb[0].mxu0
    %v1435 = vpop.f32.mrb[0].mxu0
    %1436 = vdwg.mxu0
    %1437 = vmatprep.subr.bf16.mxu0 %v1237
    %1438 = vmatpush1.bf16.msra.mxu0 %v1236
    %1439 = vmatprep.subr.bf16.mxu0 %v1239
    %1440 = vmatpush1.bf16.msra.mxu0 %v1238
    %1441 = vmatprep.subr.bf16.mxu0 %v1241
    %1442 = vmatpush1.bf16.msra.mxu0 %v1240
    %1443 = vmatprep.subr.bf16.mxu0 %v1243
    %1444 = vmatpush1.bf16.msra.mxu0 %v1242
    %1445 = vmatprep.subr.bf16.mxu0 %v1245
    %1446 = vmatpush1.bf16.msra.mxu0 %v1244
    %1447 = vmatprep.subr.bf16.mxu0 %v1247
    %1448 = vmatpush1.bf16.msra.mxu0 %v1246
    %1449 = vmatprep.subr.bf16.mxu0 %v1249
    %1450 = vmatpush1.bf16.msra.mxu0 %v1248
    %1451 = vmatprep.subr.bf16.mxu0 %v1251
    %1452 = vmatpush1.bf16.msra.mxu0 %v1250
    %1453 = vmatprep.subr.bf16.mxu0 %v1253
    %1454 = vmatpush1.bf16.msra.mxu0 %v1252
    %1455 = vmatprep.subr.bf16.mxu0 %v1255
    %1456 = vmatpush1.bf16.msra.mxu0 %v1254
    %1457 = vmatprep.subr.bf16.mxu0 %v1257
    %1458 = vmatpush1.bf16.msra.mxu0 %v1256
    %1459 = vmatprep.subr.bf16.mxu0 %v1259
    %1460 = vmatpush1.bf16.msra.mxu0 %v1258
    %1461 = vmatprep.subr.bf16.mxu0 %v1261
    %1462 = vmatpush1.bf16.msra.mxu0 %v1260
    %1463 = vmatprep.subr.bf16.mxu0 %v1263
    %1464 = vmatpush1.bf16.msra.mxu0 %v1262
    %1465 = vmatprep.subr.bf16.mxu0 %v1265
    %1466 = vmatpush1.bf16.msra.mxu0 %v1264
    %1467 = vmatprep.subr.bf16.mxu0 %v1267
    %1468 = vmatpush1.bf16.msra.mxu0 %v1266
    %1469 = vmatprep.mubr.bf16.mxu0 %v817
    %1470 = vmatmul.mubr.bf16.gmra.mrb[0].mxu0 %v816
    %v1471 = vpop.f32.mrb[0].mxu0
    %v1472 = vadd.f32 %v1431, %v1471
    %v1473 = vpop.f32.mrb[0].mxu0
    %v1474 = vadd.f32 %v1433, %v1473
    %v1475 = vpop.f32.mrb[0].mxu0
    %v1476 = vpop.f32.mrb[0].mxu0
    %1477 = vdwg.mxu0
    %1478 = vmatprep.subr.bf16.mxu0 %v1269
    %1479 = vmatpush1.bf16.msra.mxu0 %v1268
    %1480 = vmatprep.subr.bf16.mxu0 %v1271
    %1481 = vmatpush1.bf16.msra.mxu0 %v1270
    %1482 = vmatprep.subr.bf16.mxu0 %v1273
    %1483 = vmatpush1.bf16.msra.mxu0 %v1272
    %1484 = vmatprep.subr.bf16.mxu0 %v1275
    %1485 = vmatpush1.bf16.msra.mxu0 %v1274
    %1486 = vmatprep.subr.bf16.mxu0 %v1277
    %1487 = vmatpush1.bf16.msra.mxu0 %v1276
    %1488 = vmatprep.subr.bf16.mxu0 %v1279
    %1489 = vmatpush1.bf16.msra.mxu0 %v1278
    %1490 = vmatprep.subr.bf16.mxu0 %v1281
    %1491 = vmatpush1.bf16.msra.mxu0 %v1280
    %1492 = vmatprep.subr.bf16.mxu0 %v1283
    %1493 = vmatpush1.bf16.msra.mxu0 %v1282
    %1494 = vmatprep.subr.bf16.mxu0 %v1285
    %1495 = vmatpush1.bf16.msra.mxu0 %v1284
    %1496 = vmatprep.subr.bf16.mxu0 %v1287
    %1497 = vmatpush1.bf16.msra.mxu0 %v1286
    %1498 = vmatprep.subr.bf16.mxu0 %v1289
    %1499 = vmatpush1.bf16.msra.mxu0 %v1288
    %1500 = vmatprep.subr.bf16.mxu0 %v1291
    %1501 = vmatpush1.bf16.msra.mxu0 %v1290
    %1502 = vmatprep.subr.bf16.mxu0 %v1293
    %1503 = vmatpush1.bf16.msra.mxu0 %v1292
    %1504 = vmatprep.subr.bf16.mxu0 %v1295
    %1505 = vmatpush1.bf16.msra.mxu0 %v1294
    %1506 = vmatprep.subr.bf16.mxu0 %v1297
    %1507 = vmatpush1.bf16.msra.mxu0 %v1296
    %1508 = vmatprep.subr.bf16.mxu0 %v1299
    %1509 = vmatpush1.bf16.msra.mxu0 %v1298
    %1510 = vmatprep.mubr.bf16.mxu0 %v819
    %1511 = vmatmul.mubr.bf16.gmra.mrb[0].mxu0 %v818
    %v1512 = vpop.f32.mrb[0].mxu0
    %v1513 = vadd.f32 %v1472, %v1512
    %v1514 = vpop.f32.mrb[0].mxu0
    %v1515 = vadd.f32 %v1474, %v1514
    %v1516 = vpop.f32.mrb[0].mxu0
    %v1517 = vpop.f32.mrb[0].mxu0
    %1518 = vdwg.mxu0
    %v1519 = vld [vmem:[%s3] sm:$0xff]
    %v1520 = vlaneseq
    %v1521 = vand.u32 %v1520, 127
    %v1522 = vadd.s32 %v1521, 128
    %1523 = vset.pattern.permute.xlu0 0
    %1524 = vperm.xlu0 %1523, %v1519
    %v1525 = vpop.permute.xlu0 %1524
    %vm1526 = vcmp.eq.s32.totalorder %v1521, %v1525
    %vm1527 = vcmp.eq.s32.totalorder %v1522, %v1525
    %v1528 = vsub.f32 %v808, 0.25
    %v1529 = vsub.f32 %v810, 0.25
    %v1530 = vsel %vm1526, %v1528, %v808
    %v1531 = vsel %vm1527, %v1529, %v810
    %v1532 = vmul.f32 %v1530, 20.0
    %v1533 = vmul.f32 %v1531, 20.0
    %v1534 = vmax.f32 %v1532, %v1533
    %1535 = vmax.xlane.f32.xlu0 %v1534
    %v1536 = vpop.xlane.xlu0 %1535
    %v1537 = vsub.f32 %v1532, %v1536
    %v1538 = vsub.f32 %v1533, %v1536
    %v1539 = vmul.f32 %v1537, 1.442695
    %v1540 = vpow.pop %v1539
    %v1541 = vmul.f32 %v1538, 1.442695
    %v1542 = vpow.pop %v1541
    %v1543 = vadd.f32 %v1540, %v1542
    %1544 = vadd.xlane.f32.xlu0 %v1543
    %v1545 = vpop.xlane.xlu0 %1544
    %v1546 = vlog2.pop %v1545
    %v1547 = vmul.f32 %v1546, 0.6931472
    %v1548 = vadd.f32 %v1536, %v1547
    %v1549 = vsel %vm1526, %v1532, 0.0
    %v1550 = vsel %vm1527, %v1533, 0.0
    %v1551 = vadd.f32 %v1549, %v1550
    %1552 = vadd.xlane.f32.xlu0 %v1551
    %v1553 = vpop.xlane.xlu0 %1552
    %v1554 = vsub.f32 %v1548, %v1553
    %1555 = vset.pattern.permute.xlu0 1
    %1556 = vperm.xlu0 %1555, %v1519
    %v1557 = vpop.permute.xlu0 %1556
    %vm1558 = vcmp.eq.s32.totalorder %v1521, %v1557
    %vm1559 = vcmp.eq.s32.totalorder %v1522, %v1557
    %v1560 = vsub.f32 %v1513, 0.3
    %v1561 = vsub.f32 %v1515, 0.3
    %v1562 = vsel %vm1558, %v1560, %v1513
    %v1563 = vsel %vm1559, %v1561, %v1515
    %v1564 = vmul.f32 %v1562, 10.0
    %v1565 = vmul.f32 %v1563, 10.0
    %v1566 = vmax.f32 %v1564, %v1565
    %1567 = vmax.xlane.f32.xlu0 %v1566
    %v1568 = vpop.xlane.xlu0 %1567
    %v1569 = vsub.f32 %v1564, %v1568
    %v1570 = vsub.f32 %v1565, %v1568
    %v1571 = vmul.f32 %v1569, 1.442695
    %v1572 = vpow.pop %v1571
    %v1573 = vmul.f32 %v1570, 1.442695
    %v1574 = vpow.pop %v1573
    %v1575 = vadd.f32 %v1572, %v1574
    %1576 = vadd.xlane.f32.xlu0 %v1575
    %v1577 = vpop.xlane.xlu0 %1576
    %v1578 = vlog2.pop %v1577
    %v1579 = vmul.f32 %v1578, 0.6931472
    %v1580 = vadd.f32 %v1568, %v1579
    %v1581 = vsel %vm1558, %v1564, 0.0
    %v1582 = vsel %vm1559, %v1565, 0.0
    %v1583 = vadd.f32 %v1581, %v1582
    %1584 = vadd.xlane.f32.xlu0 %v1583
    %v1585 = vpop.xlane.xlu0 %1584
    %v1586 = vsub.f32 %v1580, %v1585
    %v1587 = vmul.f32 %v82, %v103
    %v1588 = vmul.f32 %v83, %v104
    %v1589 = vmul.f32 %v84, %v105
    %v1590 = vmul.f32 %v85, %v106
    %v1591 = vmul.f32 %v86, %v107
    %v1592 = vmul.f32 %v87, %v108
    %v1593 = vadd.f32 %v1587, %v1588
    %v1594 = vadd.f32 %v1593, %v1589
    %v1595 = vadd.f32 %v1594, %v1590
    %v1596 = vadd.f32 %v1595, %v1591
    %v1597 = vadd.f32 %v1596, %v1592
    %1598 = vadd.xlane.f32.xlu0 %v1597
    %v1599 = vpop.xlane.xlu0 %1598
    %v1600 = vsub.f32 1.0, %v1599
    %vm1601 = vcmask 7168
    %v1602 = vsel %vm1601, %v1554, 0.0
    %1603 = vadd.xlane.f32.xlu0 %v1602
    %v1604 = vpop.xlane.xlu0 %1603
    %v1605 = vrot.slane %v1604, 4
    %v1606 = vadd.f32 %v1604, %v1605
    %v1607 = vrot.slane %v1606, 2
    %v1608 = vadd.f32 %v1606, %v1607
    %v1609 = vrot.slane %v1608, 1
    %v1610 = vadd.f32 %v1608, %v1609
    %s1611 = vtos %v1610
    %s1612 = smul.f32 %s1611, 0.125
    %v1613 = vsel %vm1601, %v1586, 0.0
    %1614 = vadd.xlane.f32.xlu0 %v1613
    %v1615 = vpop.xlane.xlu0 %1614
    %v1616 = vrot.slane %v1615, 4
    %v1617 = vadd.f32 %v1615, %v1616
    %v1618 = vrot.slane %v1617, 2
    %v1619 = vadd.f32 %v1617, %v1618
    %v1620 = vrot.slane %v1619, 1
    %v1621 = vadd.f32 %v1619, %v1620
    %s1622 = vtos %v1621
    %s1623 = smul.f32 %s1622, 0.125
    %s1624 = sadd.f32 %s1612, %s1623
    %v1625 = vsel %vm1601, %v1600, 0.0
    %1626 = vadd.xlane.f32.xlu0 %v1625
    %v1627 = vpop.xlane.xlu0 %1626
    %v1628 = vrot.slane %v1627, 4
    %v1629 = vadd.f32 %v1627, %v1628
    %v1630 = vrot.slane %v1629, 2
    %v1631 = vadd.f32 %v1629, %v1630
    %v1632 = vrot.slane %v1631, 1
    %v1633 = vadd.f32 %v1631, %v1632
    %s1634 = vtos %v1633
    %s1635 = smul.f32 %s1634, 0.0625
    %s1636 = sadd.f32 %s1624, %s1635
    %s1637 = scalar_lea.smem [#allocation8], 0
    %1638 = sst [smem:[%s1637]] %s1636
    // Predicated region
    $region30: #{tpu_custom_call.1} parent=1 // pred_check
      _
    $region31: #{tpu_custom_call.1} parent=1 // pred_check_branch
      %1640 = sbr.rel (0) target = $region33
    $region32: #{tpu_custom_call.1} parent=1 // pred_region
      %s1642 = ssub.s32 16, 16
      %1643 = vsyncadd [#allocation4], %s1642
      %1646 = dma.smem_to_hbm [#allocation8], 16, %s4, [#allocation4]
    $region33: #{tpu_custom_call.1} parent=1 // pred_fallthru
      _
    // Predicated region
    $region34: #{tpu_custom_call.1} parent=1 // pred_check
      _
    $region35: #{tpu_custom_call.1} parent=1 // pred_check_branch
      %1648 = sbr.rel (0) target = $region37
    $region36: #{tpu_custom_call.1} parent=1 // pred_region
      %1649 = dma.done [#allocation4], 16
    $region37: #{tpu_custom_call.1} parent=1 // pred_fallthru
      _
    %1650 = sfence
    %1651 = vsyncpa [#allocation3], 1
    %1652 = vsyncpa [#allocation6], 1
    %1653 = vsyncpa [#allocation4], 1

</llo_original>
